<compile_context>
chip_gen: v6e
topology: v6e:2x2x1
jax: 0.10.0
libtpu: 0.0.40
codegen_flags: <defaults>
</compile_context>

<pallas_src>
import jax
import jax.numpy as jnp
from jax.experimental import pallas as pl
from jax.experimental.pallas import tpu as pltpu


# ---------------------------------------------------------------------------
# Pallas kernel
# ---------------------------------------------------------------------------
def lstm_fc_kernel(x_ref,        # (S*Bp, in_dim)   time-major flattened input
                   wih0_ref,     # (in_dim, 4H)     W_ih_l0^T
                   b0_ref,       # (1, 4H)          b_ih_l0 + b_hh_l0
                   whh_ref,      # (2H, 8H)         block-diag [W_hh_l0^T | W_hh_l1^T]
                   wih1_ref,     # (H, 4H)          W_ih_l1^T
                   b1_ref,       # (1, 4H)          b_ih_l1 + b_hh_l1
                   wfc_ref,      # (H, out_dim)     fc.weight^T
                   bfc_ref,      # (1, out_dim)     fc.bias
                   out_ref):     # (Bp, out_dim)
    Bp = out_ref.shape[0]
    S = x_ref.shape[0] // Bp
    H = wih1_ref.shape[0]

    wih1 = wih1_ref[...]
    whh = whh_ref[...]
    b1 = b1_ref[...]

    # Hoisted layer-0 input projection: one (S*Bp, in) @ (in, 4H) matmul, bias folded in.
    xproj = (jnp.dot(x_ref[...], wih0_ref[...],
                     preferred_element_type=jnp.float32) + b0_ref[...])

    h0 = jnp.zeros((Bp, H), jnp.float32)
    c0 = jnp.zeros((Bp, H), jnp.float32)
    h1 = jnp.zeros((Bp, H), jnp.float32)
    c1 = jnp.zeros((Bp, H), jnp.float32)

    def cell(gates, c):
        # Two full-vreg EUP passes (sigmoid, tanh); i/f/g/o lane picks go to the XLU.
        sg = jax.nn.sigmoid(gates)
        tg = jnp.tanh(gates)
        i = sg[:, 0 * H:1 * H]
        f = sg[:, 1 * H:2 * H]
        g = tg[:, 2 * H:3 * H]
        o = sg[:, 3 * H:4 * H]
        c_new = f * c + i * g
        h_new = o * jnp.tanh(c_new)
        return h_new, c_new

    # seq is small and static -> unrolled Python loop (static, sublane-aligned slices).
    for t in range(S):
        # One fused hidden-hidden matmul for BOTH layers (block-diagonal weight):
        #   cols 0:4H  = h0_{t-1} @ W_hh_l0^T,  cols 4H:8H = h1_{t-1} @ W_hh_l1^T
        hcat = jnp.concatenate([h0, h1], axis=1)                        # (Bp, 2H)
        hh = jnp.dot(hcat, whh, preferred_element_type=jnp.float32)     # (Bp, 8H)

        gates0 = xproj[t * Bp:(t + 1) * Bp, :] + hh[:, :4 * H]
        h0, c0 = cell(gates0, c0)

        gates1 = (jnp.dot(h0, wih1, preferred_element_type=jnp.float32)
                  + b1 + hh[:, 4 * H:])
        h1, c1 = cell(gates1, c1)

    # fc(hidden[-1]) == fc applied to the top layer's final hidden state.
    out_ref[...] = (jnp.dot(h1, wfc_ref[...], preferred_element_type=jnp.float32)
                    + bfc_ref[...])


# ---------------------------------------------------------------------------
# Wrapper
# ---------------------------------------------------------------------------
def action_to_obs_lstm(x, params):
    B, S, in_dim = x.shape
    H = params["w_hh_l0"].shape[1]
    out_dim = params["w_fc"].shape[0]

    # Pad batch to a multiple of 8 sublanes (zero rows; sliced off after the call).
    Bp = ((B + 7) // 8) * 8
    xp = jnp.zeros((Bp, S, in_dim), jnp.float32).at[:B].set(x.astype(jnp.float32))
    # Time-major flatten so step t is the contiguous, sublane-aligned row block
    # [t*Bp, (t+1)*Bp) of the hoisted projection.
    x_flat = jnp.transpose(xp, (1, 0, 2)).reshape(S * Bp, in_dim)

    # Block-diagonal hidden-hidden weight: rows 0:H -> layer-0 gates, rows H:2H -> layer-1.
    w_block = jnp.zeros((2 * H, 8 * H), jnp.float32)
    w_block = w_block.at[:H, :4 * H].set(params["w_hh_l0"].T)
    w_block = w_block.at[H:, 4 * H:].set(params["w_hh_l1"].T)

    args = (
        x_flat,
        params["w_ih_l0"].T,
        (params["b_ih_l0"] + params["b_hh_l0"]).reshape(1, -1),
        w_block,
        params["w_ih_l1"].T,
        (params["b_ih_l1"] + params["b_hh_l1"]).reshape(1, -1),
        params["w_fc"].T,
        params["b_fc"].reshape(1, -1),
    )

    vmem = pl.BlockSpec(memory_space=pltpu.MemorySpace.VMEM)
    out_full = pl.pallas_call(
        lstm_fc_kernel,
        out_shape=jax.ShapeDtypeStruct((Bp, out_dim), jnp.float32),
        in_specs=[vmem] * len(args),
        out_specs=vmem,
    )(*args)
    return out_full[:B]


# ---------------------------------------------------------------------------
# Pure-JAX reference (mirrors PyTorch nn.LSTM + nn.Linear forward)
# ---------------------------------------------------------------------------
def ref_forward(x, params):
    B, S, _ = x.shape
    H = params["w_hh_l0"].shape[1]

    def layer(inp, wih, whh, bih, bhh):
        h = jnp.zeros((B, H), jnp.float32)
        c = jnp.zeros((B, H), jnp.float32)
        hs = []
        for t in range(S):
            gates = inp[:, t, :] @ wih.T + bih + h @ whh.T + bhh
            i, f, g, o = jnp.split(gates, 4, axis=1)
            i = jax.nn.sigmoid(i)
            f = jax.nn.sigmoid(f)
            g = jnp.tanh(g)
            o = jax.nn.sigmoid(o)
            c = f * c + i * g
            h = o * jnp.tanh(c)
            hs.append(h)
        return jnp.stack(hs, axis=1), h

    seq0, _ = layer(x, params["w_ih_l0"], params["w_hh_l0"],
                    params["b_ih_l0"], params["b_hh_l0"])
    _, h_last = layer(seq0, params["w_ih_l1"], params["w_hh_l1"],
                      params["b_ih_l1"], params["b_hh_l1"])
    return h_last @ params["w_fc"].T + params["b_fc"]


# ---------------------------------------------------------------------------
# Deterministic parameter init (PyTorch-style uniform(-1/sqrt(H), 1/sqrt(H)))
# ---------------------------------------------------------------------------
def init_params(key, input_dim, hidden_dim, output_dim):
    H = hidden_dim
    bound = 1.0 / jnp.sqrt(jnp.float32(H))
    keys = jax.random.split(key, 10)

    def u(k, shape):
        return jax.random.uniform(k, shape, jnp.float32, -bound, bound)

    return {
        "w_ih_l0": u(keys[0], (4 * H, input_dim)),
        "w_hh_l0": u(keys[1], (4 * H, H)),
        "b_ih_l0": u(keys[2], (4 * H,)),
        "b_hh_l0": u(keys[3], (4 * H,)),
        "w_ih_l1": u(keys[4], (4 * H, H)),
        "w_hh_l1": u(keys[5], (4 * H, H)),
        "b_ih_l1": u(keys[6], (4 * H,)),
        "b_hh_l1": u(keys[7], (4 * H,)),
        "w_fc":    u(keys[8], (output_dim, H)),
        "b_fc":    u(keys[9], (output_dim,)),
    }


if __name__ == "__main__":
    # Small shapes consistent with the module: batch=2, seq=8, input_dim=4,
    # hidden_dim=32, output_dim=16, num_layers=2.
    batch, seq, input_dim, hidden_dim, output_dim = 2, 8, 4, 32, 16

    key = jax.random.PRNGKey(0)
    k_params, k_x = jax.random.split(key)
    params = init_params(k_params, input_dim, hidden_dim, output_dim)
    x = jax.random.normal(k_x, (batch, seq, input_dim), jnp.float32)

    out = action_to_obs_lstm(x, params)
    out = jax.block_until_ready(out)

    ref = jax.block_until_ready(ref_forward(x, params))
    assert out.shape == (batch, output_dim)
    assert jnp.allclose(out, ref, atol=2e-5, rtol=2e-5), (
        f"max abs diff = {jnp.max(jnp.abs(out - ref))}")

    print("KERNEL_OK")
</pallas_src>

<mosaic_0001>
module attributes {stable_mosaic.version = 11 : i64} {
  func.func @lstm_fc_kernel(%arg0: memref<64x4xf32, #tpu.memory_space<vmem>>, %arg1: memref<4x128xf32, #tpu.memory_space<vmem>>, %arg2: memref<1x128xf32, #tpu.memory_space<vmem>>, %arg3: memref<64x256xf32, #tpu.memory_space<vmem>>, %arg4: memref<32x128xf32, #tpu.memory_space<vmem>>, %arg5: memref<1x128xf32, #tpu.memory_space<vmem>>, %arg6: memref<32x16xf32, #tpu.memory_space<vmem>>, %arg7: memref<1x16xf32, #tpu.memory_space<vmem>>, %arg8: memref<8x16xf32, #tpu.memory_space<vmem>>) attributes {dimension_semantics = [], scalar_prefetch = 0 : i64, scratch_operands = 0 : i64, tpu.core_type = #tpu.core_type<tc>} {
    %c0 = arith.constant 0 : index
    %c0_0 = arith.constant 0 : index
    %0 = vector.load %arg4[%c0, %c0_0] : memref<32x128xf32, #tpu.memory_space<vmem>>, vector<32x128xf32>
    %c0_1 = arith.constant 0 : index
    %c0_2 = arith.constant 0 : index
    %1 = vector.load %arg3[%c0_1, %c0_2] : memref<64x256xf32, #tpu.memory_space<vmem>>, vector<64x256xf32>
    %c0_3 = arith.constant 0 : index
    %c0_4 = arith.constant 0 : index
    %2 = vector.load %arg5[%c0_3, %c0_4] : memref<1x128xf32, #tpu.memory_space<vmem>>, vector<1x128xf32>
    %c0_5 = arith.constant 0 : index
    %c0_6 = arith.constant 0 : index
    %3 = vector.load %arg0[%c0_5, %c0_6] : memref<64x4xf32, #tpu.memory_space<vmem>>, vector<64x4xf32>
    %c0_7 = arith.constant 0 : index
    %c0_8 = arith.constant 0 : index
    %4 = vector.load %arg1[%c0_7, %c0_8] : memref<4x128xf32, #tpu.memory_space<vmem>>, vector<4x128xf32>
    %cst = arith.constant dense<0.000000e+00> : vector<64x128xf32>
    %5 = tpu.matmul %3, %4, %cst {dimension_numbers = #tpu.dot_dimension_numbers<[1], [0], [0], [1], [0, 0, 1, 1], [], []>} : vector<64x4xf32>, vector<4x128xf32>, vector<64x128xf32> -> vector<64x128xf32>
    %c0_9 = arith.constant 0 : index
    %c0_10 = arith.constant 0 : index
    %6 = vector.load %arg2[%c0_9, %c0_10] : memref<1x128xf32, #tpu.memory_space<vmem>>, vector<1x128xf32>
    %7 = vector.broadcast %6 : vector<1x128xf32> to vector<64x128xf32>
    %8 = arith.addf %5, %7 : vector<64x128xf32>
    %cst_11 = arith.constant 0.000000e+00 : f32
    %9 = vector.broadcast %cst_11 : f32 to vector<8x32xf32>
    %cst_12 = arith.constant 0.000000e+00 : f32
    %10 = vector.broadcast %cst_12 : f32 to vector<8x32xf32>
    %cst_13 = arith.constant 0.000000e+00 : f32
    %11 = vector.broadcast %cst_13 : f32 to vector<8x32xf32>
    %cst_14 = arith.constant 0.000000e+00 : f32
    %12 = vector.broadcast %cst_14 : f32 to vector<8x32xf32>
    %13 = tpu.concatenate %9, %11 in 1 : vector<8x32xf32>, vector<8x32xf32> -> vector<8x64xf32>
    %cst_15 = arith.constant dense<0.000000e+00> : vector<8x256xf32>
    %14 = tpu.matmul %13, %1, %cst_15 {dimension_numbers = #tpu.dot_dimension_numbers<[1], [0], [0], [1], [0, 0, 1, 1], [], []>} : vector<8x64xf32>, vector<64x256xf32>, vector<8x256xf32> -> vector<8x256xf32>
    %15 = vector.extract_strided_slice %8 {offsets = [0, 0], sizes = [8, 128], strides = [1, 1]} : vector<64x128xf32> to vector<8x128xf32>
    %16 = vector.extract_strided_slice %14 {offsets = [0, 0], sizes = [8, 128], strides = [1, 1]} : vector<8x256xf32> to vector<8x128xf32>
    %17 = arith.addf %15, %16 : vector<8x128xf32>
    %18 = arith.negf %17 : vector<8x128xf32>
    %19 = math.exp %18 : vector<8x128xf32>
    %cst_16 = arith.constant 1.000000e+00 : f32
    %20 = vector.broadcast %cst_16 : f32 to vector<8x128xf32>
    %21 = arith.addf %20, %19 : vector<8x128xf32>
    %22 = arith.divf %20, %21 : vector<8x128xf32>
    %23 = math.tanh %17 : vector<8x128xf32>
    %24 = vector.extract_strided_slice %22 {offsets = [0, 0], sizes = [8, 32], strides = [1, 1]} : vector<8x128xf32> to vector<8x32xf32>
    %25 = vector.extract_strided_slice %22 {offsets = [0, 32], sizes = [8, 32], strides = [1, 1]} : vector<8x128xf32> to vector<8x32xf32>
    %26 = vector.extract_strided_slice %23 {offsets = [0, 64], sizes = [8, 32], strides = [1, 1]} : vector<8x128xf32> to vector<8x32xf32>
    %27 = vector.extract_strided_slice %22 {offsets = [0, 96], sizes = [8, 32], strides = [1, 1]} : vector<8x128xf32> to vector<8x32xf32>
    %28 = arith.mulf %25, %10 : vector<8x32xf32>
    %29 = arith.mulf %24, %26 : vector<8x32xf32>
    %30 = arith.addf %28, %29 : vector<8x32xf32>
    %31 = math.tanh %30 : vector<8x32xf32>
    %32 = arith.mulf %27, %31 : vector<8x32xf32>
    %cst_17 = arith.constant dense<0.000000e+00> : vector<8x128xf32>
    %33 = tpu.matmul %32, %0, %cst_17 {dimension_numbers = #tpu.dot_dimension_numbers<[1], [0], [0], [1], [0, 0, 1, 1], [], []>} : vector<8x32xf32>, vector<32x128xf32>, vector<8x128xf32> -> vector<8x128xf32>
    %34 = vector.broadcast %2 : vector<1x128xf32> to vector<8x128xf32>
    %35 = arith.addf %33, %34 : vector<8x128xf32>
    %36 = vector.extract_strided_slice %14 {offsets = [0, 128], sizes = [8, 128], strides = [1, 1]} : vector<8x256xf32> to vector<8x128xf32>
    %37 = arith.addf %35, %36 : vector<8x128xf32>
    %38 = arith.negf %37 : vector<8x128xf32>
    %39 = math.exp %38 : vector<8x128xf32>
    %cst_18 = arith.constant 1.000000e+00 : f32
    %40 = vector.broadcast %cst_18 : f32 to vector<8x128xf32>
    %41 = arith.addf %40, %39 : vector<8x128xf32>
    %42 = arith.divf %40, %41 : vector<8x128xf32>
    %43 = math.tanh %37 : vector<8x128xf32>
    %44 = vector.extract_strided_slice %42 {offsets = [0, 0], sizes = [8, 32], strides = [1, 1]} : vector<8x128xf32> to vector<8x32xf32>
    %45 = vector.extract_strided_slice %42 {offsets = [0, 32], sizes = [8, 32], strides = [1, 1]} : vector<8x128xf32> to vector<8x32xf32>
    %46 = vector.extract_strided_slice %43 {offsets = [0, 64], sizes = [8, 32], strides = [1, 1]} : vector<8x128xf32> to vector<8x32xf32>
    %47 = vector.extract_strided_slice %42 {offsets = [0, 96], sizes = [8, 32], strides = [1, 1]} : vector<8x128xf32> to vector<8x32xf32>
    %48 = arith.mulf %45, %12 : vector<8x32xf32>
    %49 = arith.mulf %44, %46 : vector<8x32xf32>
    %50 = arith.addf %48, %49 : vector<8x32xf32>
    %51 = math.tanh %50 : vector<8x32xf32>
    %52 = arith.mulf %47, %51 : vector<8x32xf32>
    %53 = tpu.concatenate %32, %52 in 1 : vector<8x32xf32>, vector<8x32xf32> -> vector<8x64xf32>
    %cst_19 = arith.constant dense<0.000000e+00> : vector<8x256xf32>
    %54 = tpu.matmul %53, %1, %cst_19 {dimension_numbers = #tpu.dot_dimension_numbers<[1], [0], [0], [1], [0, 0, 1, 1], [], []>} : vector<8x64xf32>, vector<64x256xf32>, vector<8x256xf32> -> vector<8x256xf32>
    %55 = vector.extract_strided_slice %8 {offsets = [8, 0], sizes = [8, 128], strides = [1, 1]} : vector<64x128xf32> to vector<8x128xf32>
    %56 = vector.extract_strided_slice %54 {offsets = [0, 0], sizes = [8, 128], strides = [1, 1]} : vector<8x256xf32> to vector<8x128xf32>
    %57 = arith.addf %55, %56 : vector<8x128xf32>
    %58 = arith.negf %57 : vector<8x128xf32>
    %59 = math.exp %58 : vector<8x128xf32>
    %cst_20 = arith.constant 1.000000e+00 : f32
    %60 = vector.broadcast %cst_20 : f32 to vector<8x128xf32>
    %61 = arith.addf %60, %59 : vector<8x128xf32>
    %62 = arith.divf %60, %61 : vector<8x128xf32>
    %63 = math.tanh %57 : vector<8x128xf32>
    %64 = vector.extract_strided_slice %62 {offsets = [0, 0], sizes = [8, 32], strides = [1, 1]} : vector<8x128xf32> to vector<8x32xf32>
    %65 = vector.extract_strided_slice %62 {offsets = [0, 32], sizes = [8, 32], strides = [1, 1]} : vector<8x128xf32> to vector<8x32xf32>
    %66 = vector.extract_strided_slice %63 {offsets = [0, 64], sizes = [8, 32], strides = [1, 1]} : vector<8x128xf32> to vector<8x32xf32>
    %67 = vector.extract_strided_slice %62 {offsets = [0, 96], sizes = [8, 32], strides = [1, 1]} : vector<8x128xf32> to vector<8x32xf32>
    %68 = arith.mulf %65, %30 : vector<8x32xf32>
    %69 = arith.mulf %64, %66 : vector<8x32xf32>
    %70 = arith.addf %68, %69 : vector<8x32xf32>
    %71 = math.tanh %70 : vector<8x32xf32>
    %72 = arith.mulf %67, %71 : vector<8x32xf32>
    %cst_21 = arith.constant dense<0.000000e+00> : vector<8x128xf32>
    %73 = tpu.matmul %72, %0, %cst_21 {dimension_numbers = #tpu.dot_dimension_numbers<[1], [0], [0], [1], [0, 0, 1, 1], [], []>} : vector<8x32xf32>, vector<32x128xf32>, vector<8x128xf32> -> vector<8x128xf32>
    %74 = vector.broadcast %2 : vector<1x128xf32> to vector<8x128xf32>
    %75 = arith.addf %73, %74 : vector<8x128xf32>
    %76 = vector.extract_strided_slice %54 {offsets = [0, 128], sizes = [8, 128], strides = [1, 1]} : vector<8x256xf32> to vector<8x128xf32>
    %77 = arith.addf %75, %76 : vector<8x128xf32>
    %78 = arith.negf %77 : vector<8x128xf32>
    %79 = math.exp %78 : vector<8x128xf32>
    %cst_22 = arith.constant 1.000000e+00 : f32
    %80 = vector.broadcast %cst_22 : f32 to vector<8x128xf32>
    %81 = arith.addf %80, %79 : vector<8x128xf32>
    %82 = arith.divf %80, %81 : vector<8x128xf32>
    %83 = math.tanh %77 : vector<8x128xf32>
    %84 = vector.extract_strided_slice %82 {offsets = [0, 0], sizes = [8, 32], strides = [1, 1]} : vector<8x128xf32> to vector<8x32xf32>
    %85 = vector.extract_strided_slice %82 {offsets = [0, 32], sizes = [8, 32], strides = [1, 1]} : vector<8x128xf32> to vector<8x32xf32>
    %86 = vector.extract_strided_slice %83 {offsets = [0, 64], sizes = [8, 32], strides = [1, 1]} : vector<8x128xf32> to vector<8x32xf32>
    %87 = vector.extract_strided_slice %82 {offsets = [0, 96], sizes = [8, 32], strides = [1, 1]} : vector<8x128xf32> to vector<8x32xf32>
    %88 = arith.mulf %85, %50 : vector<8x32xf32>
    %89 = arith.mulf %84, %86 : vector<8x32xf32>
    %90 = arith.addf %88, %89 : vector<8x32xf32>
    %91 = math.tanh %90 : vector<8x32xf32>
    %92 = arith.mulf %87, %91 : vector<8x32xf32>
    %93 = tpu.concatenate %72, %92 in 1 : vector<8x32xf32>, vector<8x32xf32> -> vector<8x64xf32>
    %cst_23 = arith.constant dense<0.000000e+00> : vector<8x256xf32>
    %94 = tpu.matmul %93, %1, %cst_23 {dimension_numbers = #tpu.dot_dimension_numbers<[1], [0], [0], [1], [0, 0, 1, 1], [], []>} : vector<8x64xf32>, vector<64x256xf32>, vector<8x256xf32> -> vector<8x256xf32>
    %95 = vector.extract_strided_slice %8 {offsets = [16, 0], sizes = [8, 128], strides = [1, 1]} : vector<64x128xf32> to vector<8x128xf32>
    %96 = vector.extract_strided_slice %94 {offsets = [0, 0], sizes = [8, 128], strides = [1, 1]} : vector<8x256xf32> to vector<8x128xf32>
    %97 = arith.addf %95, %96 : vector<8x128xf32>
    %98 = arith.negf %97 : vector<8x128xf32>
    %99 = math.exp %98 : vector<8x128xf32>
    %cst_24 = arith.constant 1.000000e+00 : f32
    %100 = vector.broadcast %cst_24 : f32 to vector<8x128xf32>
    %101 = arith.addf %100, %99 : vector<8x128xf32>
    %102 = arith.divf %100, %101 : vector<8x128xf32>
    %103 = math.tanh %97 : vector<8x128xf32>
    %104 = vector.extract_strided_slice %102 {offsets = [0, 0], sizes = [8, 32], strides = [1, 1]} : vector<8x128xf32> to vector<8x32xf32>
    %105 = vector.extract_strided_slice %102 {offsets = [0, 32], sizes = [8, 32], strides = [1, 1]} : vector<8x128xf32> to vector<8x32xf32>
    %106 = vector.extract_strided_slice %103 {offsets = [0, 64], sizes = [8, 32], strides = [1, 1]} : vector<8x128xf32> to vector<8x32xf32>
    %107 = vector.extract_strided_slice %102 {offsets = [0, 96], sizes = [8, 32], strides = [1, 1]} : vector<8x128xf32> to vector<8x32xf32>
    %108 = arith.mulf %105, %70 : vector<8x32xf32>
    %109 = arith.mulf %104, %106 : vector<8x32xf32>
    %110 = arith.addf %108, %109 : vector<8x32xf32>
    %111 = math.tanh %110 : vector<8x32xf32>
    %112 = arith.mulf %107, %111 : vector<8x32xf32>
    %cst_25 = arith.constant dense<0.000000e+00> : vector<8x128xf32>
    %113 = tpu.matmul %112, %0, %cst_25 {dimension_numbers = #tpu.dot_dimension_numbers<[1], [0], [0], [1], [0, 0, 1, 1], [], []>} : vector<8x32xf32>, vector<32x128xf32>, vector<8x128xf32> -> vector<8x128xf32>
    %114 = vector.broadcast %2 : vector<1x128xf32> to vector<8x128xf32>
    %115 = arith.addf %113, %114 : vector<8x128xf32>
    %116 = vector.extract_strided_slice %94 {offsets = [0, 128], sizes = [8, 128], strides = [1, 1]} : vector<8x256xf32> to vector<8x128xf32>
    %117 = arith.addf %115, %116 : vector<8x128xf32>
    %118 = arith.negf %117 : vector<8x128xf32>
    %119 = math.exp %118 : vector<8x128xf32>
    %cst_26 = arith.constant 1.000000e+00 : f32
    %120 = vector.broadcast %cst_26 : f32 to vector<8x128xf32>
    %121 = arith.addf %120, %119 : vector<8x128xf32>
    %122 = arith.divf %120, %121 : vector<8x128xf32>
    %123 = math.tanh %117 : vector<8x128xf32>
    %124 = vector.extract_strided_slice %122 {offsets = [0, 0], sizes = [8, 32], strides = [1, 1]} : vector<8x128xf32> to vector<8x32xf32>
    %125 = vector.extract_strided_slice %122 {offsets = [0, 32], sizes = [8, 32], strides = [1, 1]} : vector<8x128xf32> to vector<8x32xf32>
    %126 = vector.extract_strided_slice %123 {offsets = [0, 64], sizes = [8, 32], strides = [1, 1]} : vector<8x128xf32> to vector<8x32xf32>
    %127 = vector.extract_strided_slice %122 {offsets = [0, 96], sizes = [8, 32], strides = [1, 1]} : vector<8x128xf32> to vector<8x32xf32>
    %128 = arith.mulf %125, %90 : vector<8x32xf32>
    %129 = arith.mulf %124, %126 : vector<8x32xf32>
    %130 = arith.addf %128, %129 : vector<8x32xf32>
    %131 = math.tanh %130 : vector<8x32xf32>
    %132 = arith.mulf %127, %131 : vector<8x32xf32>
    %133 = tpu.concatenate %112, %132 in 1 : vector<8x32xf32>, vector<8x32xf32> -> vector<8x64xf32>
    %cst_27 = arith.constant dense<0.000000e+00> : vector<8x256xf32>
    %134 = tpu.matmul %133, %1, %cst_27 {dimension_numbers = #tpu.dot_dimension_numbers<[1], [0], [0], [1], [0, 0, 1, 1], [], []>} : vector<8x64xf32>, vector<64x256xf32>, vector<8x256xf32> -> vector<8x256xf32>
    %135 = vector.extract_strided_slice %8 {offsets = [24, 0], sizes = [8, 128], strides = [1, 1]} : vector<64x128xf32> to vector<8x128xf32>
    %136 = vector.extract_strided_slice %134 {offsets = [0, 0], sizes = [8, 128], strides = [1, 1]} : vector<8x256xf32> to vector<8x128xf32>
    %137 = arith.addf %135, %136 : vector<8x128xf32>
    %138 = arith.negf %137 : vector<8x128xf32>
    %139 = math.exp %138 : vector<8x128xf32>
    %cst_28 = arith.constant 1.000000e+00 : f32
    %140 = vector.broadcast %cst_28 : f32 to vector<8x128xf32>
    %141 = arith.addf %140, %139 : vector<8x128xf32>
    %142 = arith.divf %140, %141 : vector<8x128xf32>
    %143 = math.tanh %137 : vector<8x128xf32>
    %144 = vector.extract_strided_slice %142 {offsets = [0, 0], sizes = [8, 32], strides = [1, 1]} : vector<8x128xf32> to vector<8x32xf32>
    %145 = vector.extract_strided_slice %142 {offsets = [0, 32], sizes = [8, 32], strides = [1, 1]} : vector<8x128xf32> to vector<8x32xf32>
    %146 = vector.extract_strided_slice %143 {offsets = [0, 64], sizes = [8, 32], strides = [1, 1]} : vector<8x128xf32> to vector<8x32xf32>
    %147 = vector.extract_strided_slice %142 {offsets = [0, 96], sizes = [8, 32], strides = [1, 1]} : vector<8x128xf32> to vector<8x32xf32>
    %148 = arith.mulf %145, %110 : vector<8x32xf32>
    %149 = arith.mulf %144, %146 : vector<8x32xf32>
    %150 = arith.addf %148, %149 : vector<8x32xf32>
    %151 = math.tanh %150 : vector<8x32xf32>
    %152 = arith.mulf %147, %151 : vector<8x32xf32>
    %cst_29 = arith.constant dense<0.000000e+00> : vector<8x128xf32>
    %153 = tpu.matmul %152, %0, %cst_29 {dimension_numbers = #tpu.dot_dimension_numbers<[1], [0], [0], [1], [0, 0, 1, 1], [], []>} : vector<8x32xf32>, vector<32x128xf32>, vector<8x128xf32> -> vector<8x128xf32>
    %154 = vector.broadcast %2 : vector<1x128xf32> to vector<8x128xf32>
    %155 = arith.addf %153, %154 : vector<8x128xf32>
    %156 = vector.extract_strided_slice %134 {offsets = [0, 128], sizes = [8, 128], strides = [1, 1]} : vector<8x256xf32> to vector<8x128xf32>
    %157 = arith.addf %155, %156 : vector<8x128xf32>
    %158 = arith.negf %157 : vector<8x128xf32>
    %159 = math.exp %158 : vector<8x128xf32>
    %cst_30 = arith.constant 1.000000e+00 : f32
    %160 = vector.broadcast %cst_30 : f32 to vector<8x128xf32>
    %161 = arith.addf %160, %159 : vector<8x128xf32>
    %162 = arith.divf %160, %161 : vector<8x128xf32>
    %163 = math.tanh %157 : vector<8x128xf32>
    %164 = vector.extract_strided_slice %162 {offsets = [0, 0], sizes = [8, 32], strides = [1, 1]} : vector<8x128xf32> to vector<8x32xf32>
    %165 = vector.extract_strided_slice %162 {offsets = [0, 32], sizes = [8, 32], strides = [1, 1]} : vector<8x128xf32> to vector<8x32xf32>
    %166 = vector.extract_strided_slice %163 {offsets = [0, 64], sizes = [8, 32], strides = [1, 1]} : vector<8x128xf32> to vector<8x32xf32>
    %167 = vector.extract_strided_slice %162 {offsets = [0, 96], sizes = [8, 32], strides = [1, 1]} : vector<8x128xf32> to vector<8x32xf32>
    %168 = arith.mulf %165, %130 : vector<8x32xf32>
    %169 = arith.mulf %164, %166 : vector<8x32xf32>
    %170 = arith.addf %168, %169 : vector<8x32xf32>
    %171 = math.tanh %170 : vector<8x32xf32>
    %172 = arith.mulf %167, %171 : vector<8x32xf32>
    %173 = tpu.concatenate %152, %172 in 1 : vector<8x32xf32>, vector<8x32xf32> -> vector<8x64xf32>
    %cst_31 = arith.constant dense<0.000000e+00> : vector<8x256xf32>
    %174 = tpu.matmul %173, %1, %cst_31 {dimension_numbers = #tpu.dot_dimension_numbers<[1], [0], [0], [1], [0, 0, 1, 1], [], []>} : vector<8x64xf32>, vector<64x256xf32>, vector<8x256xf32> -> vector<8x256xf32>
    %175 = vector.extract_strided_slice %8 {offsets = [32, 0], sizes = [8, 128], strides = [1, 1]} : vector<64x128xf32> to vector<8x128xf32>
    %176 = vector.extract_strided_slice %174 {offsets = [0, 0], sizes = [8, 128], strides = [1, 1]} : vector<8x256xf32> to vector<8x128xf32>
    %177 = arith.addf %175, %176 : vector<8x128xf32>
    %178 = arith.negf %177 : vector<8x128xf32>
    %179 = math.exp %178 : vector<8x128xf32>
    %cst_32 = arith.constant 1.000000e+00 : f32
    %180 = vector.broadcast %cst_32 : f32 to vector<8x128xf32>
    %181 = arith.addf %180, %179 : vector<8x128xf32>
    %182 = arith.divf %180, %181 : vector<8x128xf32>
    %183 = math.tanh %177 : vector<8x128xf32>
    %184 = vector.extract_strided_slice %182 {offsets = [0, 0], sizes = [8, 32], strides = [1, 1]} : vector<8x128xf32> to vector<8x32xf32>
    %185 = vector.extract_strided_slice %182 {offsets = [0, 32], sizes = [8, 32], strides = [1, 1]} : vector<8x128xf32> to vector<8x32xf32>
    %186 = vector.extract_strided_slice %183 {offsets = [0, 64], sizes = [8, 32], strides = [1, 1]} : vector<8x128xf32> to vector<8x32xf32>
    %187 = vector.extract_strided_slice %182 {offsets = [0, 96], sizes = [8, 32], strides = [1, 1]} : vector<8x128xf32> to vector<8x32xf32>
    %188 = arith.mulf %185, %150 : vector<8x32xf32>
    %189 = arith.mulf %184, %186 : vector<8x32xf32>
    %190 = arith.addf %188, %189 : vector<8x32xf32>
    %191 = math.tanh %190 : vector<8x32xf32>
    %192 = arith.mulf %187, %191 : vector<8x32xf32>
    %cst_33 = arith.constant dense<0.000000e+00> : vector<8x128xf32>
    %193 = tpu.matmul %192, %0, %cst_33 {dimension_numbers = #tpu.dot_dimension_numbers<[1], [0], [0], [1], [0, 0, 1, 1], [], []>} : vector<8x32xf32>, vector<32x128xf32>, vector<8x128xf32> -> vector<8x128xf32>
    %194 = vector.broadcast %2 : vector<1x128xf32> to vector<8x128xf32>
    %195 = arith.addf %193, %194 : vector<8x128xf32>
    %196 = vector.extract_strided_slice %174 {offsets = [0, 128], sizes = [8, 128], strides = [1, 1]} : vector<8x256xf32> to vector<8x128xf32>
    %197 = arith.addf %195, %196 : vector<8x128xf32>
    %198 = arith.negf %197 : vector<8x128xf32>
    %199 = math.exp %198 : vector<8x128xf32>
    %cst_34 = arith.constant 1.000000e+00 : f32
    %200 = vector.broadcast %cst_34 : f32 to vector<8x128xf32>
    %201 = arith.addf %200, %199 : vector<8x128xf32>
    %202 = arith.divf %200, %201 : vector<8x128xf32>
    %203 = math.tanh %197 : vector<8x128xf32>
    %204 = vector.extract_strided_slice %202 {offsets = [0, 0], sizes = [8, 32], strides = [1, 1]} : vector<8x128xf32> to vector<8x32xf32>
    %205 = vector.extract_strided_slice %202 {offsets = [0, 32], sizes = [8, 32], strides = [1, 1]} : vector<8x128xf32> to vector<8x32xf32>
    %206 = vector.extract_strided_slice %203 {offsets = [0, 64], sizes = [8, 32], strides = [1, 1]} : vector<8x128xf32> to vector<8x32xf32>
    %207 = vector.extract_strided_slice %202 {offsets = [0, 96], sizes = [8, 32], strides = [1, 1]} : vector<8x128xf32> to vector<8x32xf32>
    %208 = arith.mulf %205, %170 : vector<8x32xf32>
    %209 = arith.mulf %204, %206 : vector<8x32xf32>
    %210 = arith.addf %208, %209 : vector<8x32xf32>
    %211 = math.tanh %210 : vector<8x32xf32>
    %212 = arith.mulf %207, %211 : vector<8x32xf32>
    %213 = tpu.concatenate %192, %212 in 1 : vector<8x32xf32>, vector<8x32xf32> -> vector<8x64xf32>
    %cst_35 = arith.constant dense<0.000000e+00> : vector<8x256xf32>
    %214 = tpu.matmul %213, %1, %cst_35 {dimension_numbers = #tpu.dot_dimension_numbers<[1], [0], [0], [1], [0, 0, 1, 1], [], []>} : vector<8x64xf32>, vector<64x256xf32>, vector<8x256xf32> -> vector<8x256xf32>
    %215 = vector.extract_strided_slice %8 {offsets = [40, 0], sizes = [8, 128], strides = [1, 1]} : vector<64x128xf32> to vector<8x128xf32>
    %216 = vector.extract_strided_slice %214 {offsets = [0, 0], sizes = [8, 128], strides = [1, 1]} : vector<8x256xf32> to vector<8x128xf32>
    %217 = arith.addf %215, %216 : vector<8x128xf32>
    %218 = arith.negf %217 : vector<8x128xf32>
    %219 = math.exp %218 : vector<8x128xf32>
    %cst_36 = arith.constant 1.000000e+00 : f32
    %220 = vector.broadcast %cst_36 : f32 to vector<8x128xf32>
    %221 = arith.addf %220, %219 : vector<8x128xf32>
    %222 = arith.divf %220, %221 : vector<8x128xf32>
    %223 = math.tanh %217 : vector<8x128xf32>
    %224 = vector.extract_strided_slice %222 {offsets = [0, 0], sizes = [8, 32], strides = [1, 1]} : vector<8x128xf32> to vector<8x32xf32>
    %225 = vector.extract_strided_slice %222 {offsets = [0, 32], sizes = [8, 32], strides = [1, 1]} : vector<8x128xf32> to vector<8x32xf32>
    %226 = vector.extract_strided_slice %223 {offsets = [0, 64], sizes = [8, 32], strides = [1, 1]} : vector<8x128xf32> to vector<8x32xf32>
    %227 = vector.extract_strided_slice %222 {offsets = [0, 96], sizes = [8, 32], strides = [1, 1]} : vector<8x128xf32> to vector<8x32xf32>
    %228 = arith.mulf %225, %190 : vector<8x32xf32>
    %229 = arith.mulf %224, %226 : vector<8x32xf32>
    %230 = arith.addf %228, %229 : vector<8x32xf32>
    %231 = math.tanh %230 : vector<8x32xf32>
    %232 = arith.mulf %227, %231 : vector<8x32xf32>
    %cst_37 = arith.constant dense<0.000000e+00> : vector<8x128xf32>
    %233 = tpu.matmul %232, %0, %cst_37 {dimension_numbers = #tpu.dot_dimension_numbers<[1], [0], [0], [1], [0, 0, 1, 1], [], []>} : vector<8x32xf32>, vector<32x128xf32>, vector<8x128xf32> -> vector<8x128xf32>
    %234 = vector.broadcast %2 : vector<1x128xf32> to vector<8x128xf32>
    %235 = arith.addf %233, %234 : vector<8x128xf32>
    %236 = vector.extract_strided_slice %214 {offsets = [0, 128], sizes = [8, 128], strides = [1, 1]} : vector<8x256xf32> to vector<8x128xf32>
    %237 = arith.addf %235, %236 : vector<8x128xf32>
    %238 = arith.negf %237 : vector<8x128xf32>
    %239 = math.exp %238 : vector<8x128xf32>
    %cst_38 = arith.constant 1.000000e+00 : f32
    %240 = vector.broadcast %cst_38 : f32 to vector<8x128xf32>
    %241 = arith.addf %240, %239 : vector<8x128xf32>
    %242 = arith.divf %240, %241 : vector<8x128xf32>
    %243 = math.tanh %237 : vector<8x128xf32>
    %244 = vector.extract_strided_slice %242 {offsets = [0, 0], sizes = [8, 32], strides = [1, 1]} : vector<8x128xf32> to vector<8x32xf32>
    %245 = vector.extract_strided_slice %242 {offsets = [0, 32], sizes = [8, 32], strides = [1, 1]} : vector<8x128xf32> to vector<8x32xf32>
    %246 = vector.extract_strided_slice %243 {offsets = [0, 64], sizes = [8, 32], strides = [1, 1]} : vector<8x128xf32> to vector<8x32xf32>
    %247 = vector.extract_strided_slice %242 {offsets = [0, 96], sizes = [8, 32], strides = [1, 1]} : vector<8x128xf32> to vector<8x32xf32>
    %248 = arith.mulf %245, %210 : vector<8x32xf32>
    %249 = arith.mulf %244, %246 : vector<8x32xf32>
    %250 = arith.addf %248, %249 : vector<8x32xf32>
    %251 = math.tanh %250 : vector<8x32xf32>
    %252 = arith.mulf %247, %251 : vector<8x32xf32>
    %253 = tpu.concatenate %232, %252 in 1 : vector<8x32xf32>, vector<8x32xf32> -> vector<8x64xf32>
    %cst_39 = arith.constant dense<0.000000e+00> : vector<8x256xf32>
    %254 = tpu.matmul %253, %1, %cst_39 {dimension_numbers = #tpu.dot_dimension_numbers<[1], [0], [0], [1], [0, 0, 1, 1], [], []>} : vector<8x64xf32>, vector<64x256xf32>, vector<8x256xf32> -> vector<8x256xf32>
    %255 = vector.extract_strided_slice %8 {offsets = [48, 0], sizes = [8, 128], strides = [1, 1]} : vector<64x128xf32> to vector<8x128xf32>
    %256 = vector.extract_strided_slice %254 {offsets = [0, 0], sizes = [8, 128], strides = [1, 1]} : vector<8x256xf32> to vector<8x128xf32>
    %257 = arith.addf %255, %256 : vector<8x128xf32>
    %258 = arith.negf %257 : vector<8x128xf32>
    %259 = math.exp %258 : vector<8x128xf32>
    %cst_40 = arith.constant 1.000000e+00 : f32
    %260 = vector.broadcast %cst_40 : f32 to vector<8x128xf32>
    %261 = arith.addf %260, %259 : vector<8x128xf32>
    %262 = arith.divf %260, %261 : vector<8x128xf32>
    %263 = math.tanh %257 : vector<8x128xf32>
    %264 = vector.extract_strided_slice %262 {offsets = [0, 0], sizes = [8, 32], strides = [1, 1]} : vector<8x128xf32> to vector<8x32xf32>
    %265 = vector.extract_strided_slice %262 {offsets = [0, 32], sizes = [8, 32], strides = [1, 1]} : vector<8x128xf32> to vector<8x32xf32>
    %266 = vector.extract_strided_slice %263 {offsets = [0, 64], sizes = [8, 32], strides = [1, 1]} : vector<8x128xf32> to vector<8x32xf32>
    %267 = vector.extract_strided_slice %262 {offsets = [0, 96], sizes = [8, 32], strides = [1, 1]} : vector<8x128xf32> to vector<8x32xf32>
    %268 = arith.mulf %265, %230 : vector<8x32xf32>
    %269 = arith.mulf %264, %266 : vector<8x32xf32>
    %270 = arith.addf %268, %269 : vector<8x32xf32>
    %271 = math.tanh %270 : vector<8x32xf32>
    %272 = arith.mulf %267, %271 : vector<8x32xf32>
    %cst_41 = arith.constant dense<0.000000e+00> : vector<8x128xf32>
    %273 = tpu.matmul %272, %0, %cst_41 {dimension_numbers = #tpu.dot_dimension_numbers<[1], [0], [0], [1], [0, 0, 1, 1], [], []>} : vector<8x32xf32>, vector<32x128xf32>, vector<8x128xf32> -> vector<8x128xf32>
    %274 = vector.broadcast %2 : vector<1x128xf32> to vector<8x128xf32>
    %275 = arith.addf %273, %274 : vector<8x128xf32>
    %276 = vector.extract_strided_slice %254 {offsets = [0, 128], sizes = [8, 128], strides = [1, 1]} : vector<8x256xf32> to vector<8x128xf32>
    %277 = arith.addf %275, %276 : vector<8x128xf32>
    %278 = arith.negf %277 : vector<8x128xf32>
    %279 = math.exp %278 : vector<8x128xf32>
    %cst_42 = arith.constant 1.000000e+00 : f32
    %280 = vector.broadcast %cst_42 : f32 to vector<8x128xf32>
    %281 = arith.addf %280, %279 : vector<8x128xf32>
    %282 = arith.divf %280, %281 : vector<8x128xf32>
    %283 = math.tanh %277 : vector<8x128xf32>
    %284 = vector.extract_strided_slice %282 {offsets = [0, 0], sizes = [8, 32], strides = [1, 1]} : vector<8x128xf32> to vector<8x32xf32>
    %285 = vector.extract_strided_slice %282 {offsets = [0, 32], sizes = [8, 32], strides = [1, 1]} : vector<8x128xf32> to vector<8x32xf32>
    %286 = vector.extract_strided_slice %283 {offsets = [0, 64], sizes = [8, 32], strides = [1, 1]} : vector<8x128xf32> to vector<8x32xf32>
    %287 = vector.extract_strided_slice %282 {offsets = [0, 96], sizes = [8, 32], strides = [1, 1]} : vector<8x128xf32> to vector<8x32xf32>
    %288 = arith.mulf %285, %250 : vector<8x32xf32>
    %289 = arith.mulf %284, %286 : vector<8x32xf32>
    %290 = arith.addf %288, %289 : vector<8x32xf32>
    %291 = math.tanh %290 : vector<8x32xf32>
    %292 = arith.mulf %287, %291 : vector<8x32xf32>
    %293 = tpu.concatenate %272, %292 in 1 : vector<8x32xf32>, vector<8x32xf32> -> vector<8x64xf32>
    %cst_43 = arith.constant dense<0.000000e+00> : vector<8x256xf32>
    %294 = tpu.matmul %293, %1, %cst_43 {dimension_numbers = #tpu.dot_dimension_numbers<[1], [0], [0], [1], [0, 0, 1, 1], [], []>} : vector<8x64xf32>, vector<64x256xf32>, vector<8x256xf32> -> vector<8x256xf32>
    %295 = vector.extract_strided_slice %8 {offsets = [56, 0], sizes = [8, 128], strides = [1, 1]} : vector<64x128xf32> to vector<8x128xf32>
    %296 = vector.extract_strided_slice %294 {offsets = [0, 0], sizes = [8, 128], strides = [1, 1]} : vector<8x256xf32> to vector<8x128xf32>
    %297 = arith.addf %295, %296 : vector<8x128xf32>
    %298 = arith.negf %297 : vector<8x128xf32>
    %299 = math.exp %298 : vector<8x128xf32>
    %cst_44 = arith.constant 1.000000e+00 : f32
    %300 = vector.broadcast %cst_44 : f32 to vector<8x128xf32>
    %301 = arith.addf %300, %299 : vector<8x128xf32>
    %302 = arith.divf %300, %301 : vector<8x128xf32>
    %303 = math.tanh %297 : vector<8x128xf32>
    %304 = vector.extract_strided_slice %302 {offsets = [0, 0], sizes = [8, 32], strides = [1, 1]} : vector<8x128xf32> to vector<8x32xf32>
    %305 = vector.extract_strided_slice %302 {offsets = [0, 32], sizes = [8, 32], strides = [1, 1]} : vector<8x128xf32> to vector<8x32xf32>
    %306 = vector.extract_strided_slice %303 {offsets = [0, 64], sizes = [8, 32], strides = [1, 1]} : vector<8x128xf32> to vector<8x32xf32>
    %307 = vector.extract_strided_slice %302 {offsets = [0, 96], sizes = [8, 32], strides = [1, 1]} : vector<8x128xf32> to vector<8x32xf32>
    %308 = arith.mulf %305, %270 : vector<8x32xf32>
    %309 = arith.mulf %304, %306 : vector<8x32xf32>
    %310 = arith.addf %308, %309 : vector<8x32xf32>
    %311 = math.tanh %310 : vector<8x32xf32>
    %312 = arith.mulf %307, %311 : vector<8x32xf32>
    %cst_45 = arith.constant dense<0.000000e+00> : vector<8x128xf32>
    %313 = tpu.matmul %312, %0, %cst_45 {dimension_numbers = #tpu.dot_dimension_numbers<[1], [0], [0], [1], [0, 0, 1, 1], [], []>} : vector<8x32xf32>, vector<32x128xf32>, vector<8x128xf32> -> vector<8x128xf32>
    %314 = vector.broadcast %2 : vector<1x128xf32> to vector<8x128xf32>
    %315 = arith.addf %313, %314 : vector<8x128xf32>
    %316 = vector.extract_strided_slice %294 {offsets = [0, 128], sizes = [8, 128], strides = [1, 1]} : vector<8x256xf32> to vector<8x128xf32>
    %317 = arith.addf %315, %316 : vector<8x128xf32>
    %318 = arith.negf %317 : vector<8x128xf32>
    %319 = math.exp %318 : vector<8x128xf32>
    %cst_46 = arith.constant 1.000000e+00 : f32
    %320 = vector.broadcast %cst_46 : f32 to vector<8x128xf32>
    %321 = arith.addf %320, %319 : vector<8x128xf32>
    %322 = arith.divf %320, %321 : vector<8x128xf32>
    %323 = math.tanh %317 : vector<8x128xf32>
    %324 = vector.extract_strided_slice %322 {offsets = [0, 0], sizes = [8, 32], strides = [1, 1]} : vector<8x128xf32> to vector<8x32xf32>
    %325 = vector.extract_strided_slice %322 {offsets = [0, 32], sizes = [8, 32], strides = [1, 1]} : vector<8x128xf32> to vector<8x32xf32>
    %326 = vector.extract_strided_slice %323 {offsets = [0, 64], sizes = [8, 32], strides = [1, 1]} : vector<8x128xf32> to vector<8x32xf32>
    %327 = vector.extract_strided_slice %322 {offsets = [0, 96], sizes = [8, 32], strides = [1, 1]} : vector<8x128xf32> to vector<8x32xf32>
    %328 = arith.mulf %325, %290 : vector<8x32xf32>
    %329 = arith.mulf %324, %326 : vector<8x32xf32>
    %330 = arith.addf %328, %329 : vector<8x32xf32>
    %331 = math.tanh %330 : vector<8x32xf32>
    %332 = arith.mulf %327, %331 : vector<8x32xf32>
    %c0_47 = arith.constant 0 : index
    %c0_48 = arith.constant 0 : index
    %333 = vector.load %arg6[%c0_47, %c0_48] : memref<32x16xf32, #tpu.memory_space<vmem>>, vector<32x16xf32>
    %cst_49 = arith.constant dense<0.000000e+00> : vector<8x16xf32>
    %334 = tpu.matmul %332, %333, %cst_49 {dimension_numbers = #tpu.dot_dimension_numbers<[1], [0], [0], [1], [0, 0, 1, 1], [], []>} : vector<8x32xf32>, vector<32x16xf32>, vector<8x16xf32> -> vector<8x16xf32>
    %c0_50 = arith.constant 0 : index
    %c0_51 = arith.constant 0 : index
    %335 = vector.load %arg7[%c0_50, %c0_51] : memref<1x16xf32, #tpu.memory_space<vmem>>, vector<1x16xf32>
    %336 = vector.broadcast %335 : vector<1x16xf32> to vector<8x16xf32>
    %337 = arith.addf %334, %336 : vector<8x16xf32>
    %c0_52 = arith.constant 0 : index
    %c0_53 = arith.constant 0 : index
    %338 = vector.load %arg8[%c0_52, %c0_53] : memref<8x16xf32, #tpu.memory_space<vmem>>, vector<8x16xf32>
    tpu.vector_store %arg8[%c0_52, %c0_53], %337 {strides = array<i32>} : memref<8x16xf32, #tpu.memory_space<vmem>>, vector<8x16xf32>,
    return
  }
}

</mosaic_0001>

<llo_original>
// kernel: tpu_custom_call.1
$region0: #{tpu_custom_call.1}
  #allocation0 [shape = 'u32[]', space=smem, size = 0x4, offset = 0x4, fixed_abs, tag = 'smem constant byte address 0x4 - core index']
  #allocation1 [shape = 'u32[144,128]{1,0:T(1,128)}', space=vmem, size = 0x12000, scoped, tag = 'internal scratch']
  %s0 = inlined_call_operand.vmem [shape: f32[64,4], index: 0, kind: input, shape index: {}]
  %s1 = inlined_call_operand.vmem [shape: f32[4,128], index: 1, kind: input, shape index: {}]
  %s2 = inlined_call_operand.vmem [shape: f32[1,128], index: 2, kind: input, shape index: {}]
  %s3 = inlined_call_operand.hbm [shape: f32[64,256], index: 3, kind: input, shape index: {}]
  %s4 = inlined_call_operand.vmem [shape: f32[32,128], index: 4, kind: input, shape index: {}]
  %s5 = inlined_call_operand.vmem [shape: f32[1,128], index: 5, kind: input, shape index: {}]
  %s6 = inlined_call_operand.vmem [shape: f32[32,16], index: 6, kind: input, shape index: {}]
  %s7 = inlined_call_operand.vmem [shape: f32[1,16], index: 7, kind: input, shape index: {}]
  %s8 = inlined_call_operand.hbm [shape: f32[8,16], index: 8, kind: output, shape index: {}]
  %s9 = sld [smem:[#allocation0]]
  $region46: #{tpu_custom_call.1} parent=0
    _
  %s11 = ssub.s32 1, %s9
  %s12 = scalar_select 0, %s11, %s9
  $region1: #{tpu_custom_call.1} parent=0
    #allocation2 [shape = 'u8[65536]{0}', space=vmem, size = 0x10000, scoped, tag = 'input window, operand 3, single buffered']
    #allocation3 [shape = 's32[1]{0}', space=sflag, size = 0x4, scoped, tag = 'scoped memory for tpu_custom_call.1']
    #allocation4 [shape = 's32[1]{0}', space=sflag, size = 0x4, scoped, tag = 'scoped memory for tpu_custom_call.1']
    #allocation5 [shape = 'u8[4096]{0}', space=vmem, size = 0x1000, scoped, tag = 'output window, operand 0, single buffered']
    %13 = vsyncpa [#allocation3], 0
    %14 = vsyncpa [#allocation4], 0
    // Predicated region
    $region2: #{tpu_custom_call.1} parent=1 // pred_check
      _
    $region3: #{tpu_custom_call.1} parent=1 // pred_check_branch
      %16 = sbr.rel (0) target = $region5
    $region4: #{tpu_custom_call.1} parent=1 // pred_region
      _
    $region5: #{tpu_custom_call.1} parent=1 // pred_fallthru
      _
    // Predicated region
    $region6: #{tpu_custom_call.1} parent=1 // pred_check
      _
    $region7: #{tpu_custom_call.1} parent=1 // pred_check_branch
      %18 = sbr.rel (0) target = $region9
    $region8: #{tpu_custom_call.1} parent=1 // pred_region
      _
    $region9: #{tpu_custom_call.1} parent=1 // pred_fallthru
      _
    // Predicated region
    $region10: #{tpu_custom_call.1} parent=1 // pred_check
      _
    $region11: #{tpu_custom_call.1} parent=1 // pred_check_branch
      %20 = sbr.rel (0) target = $region13
    $region12: #{tpu_custom_call.1} parent=1 // pred_region
      _
    $region13: #{tpu_custom_call.1} parent=1 // pred_fallthru
      _
    // Predicated region
    $region14: #{tpu_custom_call.1} parent=1 // pred_check
      _
    $region15: #{tpu_custom_call.1} parent=1 // pred_check_branch
      %22 = sbr.rel (0) target = $region17
    $region16: #{tpu_custom_call.1} parent=1 // pred_region
      %s24 = ssub.s32 2048, 2048
      %25 = vsyncadd [#allocation3], %s24
      %s26 = sshll.u32 [#allocation2], 4
      %s27 = int_to_ptr.vmem [resolvable:$true] %s26
      %32 = dma.hbm_to_vmem [thread:$0]  %s3, 2048, %s27, [#allocation3], 256, 256, 16
    $region17: #{tpu_custom_call.1} parent=1 // pred_fallthru
      _
    // Predicated region
    $region18: #{tpu_custom_call.1} parent=1 // pred_check
      _
    $region19: #{tpu_custom_call.1} parent=1 // pred_check_branch
      %34 = sbr.rel (0) target = $region21
    $region20: #{tpu_custom_call.1} parent=1 // pred_region
      _
    $region21: #{tpu_custom_call.1} parent=1 // pred_fallthru
      _
    // Predicated region
    $region22: #{tpu_custom_call.1} parent=1 // pred_check
      _
    $region23: #{tpu_custom_call.1} parent=1 // pred_check_branch
      %36 = sbr.rel (0) target = $region25
    $region24: #{tpu_custom_call.1} parent=1 // pred_region
      _
    $region25: #{tpu_custom_call.1} parent=1 // pred_fallthru
      _
    // Predicated region
    $region26: #{tpu_custom_call.1} parent=1 // pred_check
      _
    $region27: #{tpu_custom_call.1} parent=1 // pred_check_branch
      %38 = sbr.rel (0) target = $region29
    $region28: #{tpu_custom_call.1} parent=1 // pred_region
      _
    $region29: #{tpu_custom_call.1} parent=1 // pred_fallthru
      _
    // Predicated region
    $region30: #{tpu_custom_call.1} parent=1 // pred_check
      _
    $region31: #{tpu_custom_call.1} parent=1 // pred_check_branch
      %40 = sbr.rel (0) target = $region33
    $region32: #{tpu_custom_call.1} parent=1 // pred_region
      _
    $region33: #{tpu_custom_call.1} parent=1 // pred_fallthru
      _
    // Predicated region
    $region34: #{tpu_custom_call.1} parent=1 // pred_check
      _
    $region35: #{tpu_custom_call.1} parent=1 // pred_check_branch
      %42 = sbr.rel (0) target = $region37
    $region36: #{tpu_custom_call.1} parent=1 // pred_region
      %43 = dma.done [#allocation3], 2048
    $region37: #{tpu_custom_call.1} parent=1 // pred_fallthru
      _
    %v44 = vld [vmem:[%s4] sm:$0xff]
    %v45 = vld [vmem:[%s4 + $0x8] sm:$0xff]
    %v46 = vld [vmem:[%s4 + $0x10] sm:$0xff]
    %v47 = vld [vmem:[%s4 + $0x18] sm:$0xff]
    %v48 = vld [vmem:[#allocation2] sm:$0xff]
    %v49 = vld [vmem:[#allocation2 + $0x8] sm:$0xff]
    %v50 = vld [vmem:[#allocation2 + $0x10] sm:$0xff]
    %v51 = vld [vmem:[#allocation2 + $0x18] sm:$0xff]
    %v52 = vld [vmem:[#allocation2 + $0x20] sm:$0xff]
    %v53 = vld [vmem:[#allocation2 + $0x28] sm:$0xff]
    %v54 = vld [vmem:[#allocation2 + $0x30] sm:$0xff]
    %v55 = vld [vmem:[#allocation2 + $0x38] sm:$0xff]
    %v56 = vld [vmem:[#allocation2 + $0x40] sm:$0xff]
    %v57 = vld [vmem:[#allocation2 + $0x48] sm:$0xff]
    %v58 = vld [vmem:[#allocation2 + $0x50] sm:$0xff]
    %v59 = vld [vmem:[#allocation2 + $0x58] sm:$0xff]
    %v60 = vld [vmem:[#allocation2 + $0x60] sm:$0xff]
    %v61 = vld [vmem:[#allocation2 + $0x68] sm:$0xff]
    %v62 = vld [vmem:[#allocation2 + $0x70] sm:$0xff]
    %v63 = vld [vmem:[#allocation2 + $0x78] sm:$0xff]
    %v64 = vld [vmem:[%s5] sm:$0x1]
    %v65 = vld [vmem:[%s0] sm:$0xff]
    %v66 = vld [vmem:[%s0 + $0x8] sm:$0xff]
    %v67 = vld [vmem:[%s0 + $0x10] sm:$0xff]
    %v68 = vld [vmem:[%s0 + $0x18] sm:$0xff]
    %v69 = vld [vmem:[%s0 + $0x20] sm:$0xff]
    %v70 = vld [vmem:[%s0 + $0x28] sm:$0xff]
    %v71 = vld [vmem:[%s0 + $0x30] sm:$0xff]
    %v72 = vld [vmem:[%s0 + $0x38] sm:$0xff]
    %v73 = vld [vmem:[%s1] sm:$0xf]
    %v74 = vld [vmem:[%s2] sm:$0x1]
    %v76 = vlaneseq
    %v77 = vshrl.u32 %v76, 7
    %v78 = vsub.s32 0, %v77
    %v79 = vrot.slane %v74, %v78
    %vm81 = vcmask 31744
    %v83 = vsel %vm81, %v65, 0
    %v86 = vsel %vm81, %v66, 0
    %v89 = vsel %vm81, %v67, 0
    %v92 = vsel %vm81, %v68, 0
    %v95 = vsel %vm81, %v69, 0
    %v98 = vsel %vm81, %v70, 0
    %v101 = vsel %vm81, %v71, 0
    %v104 = vsel %vm81, %v72, 0
    %vm106 = vcmask 1043456
    %v108 = vsel %vm106, %v73, 0
    %110 = vmatprep.subr.mxu0 0.0
    %111 = vmatpush1.msra.mxu0 0.0
    %112 = vmatprep.subr.mxu0 0.0
    %113 = vmatpush1.msra.mxu0 0.0
    %114 = vmatprep.subr.mxu0 0.0
    %115 = vmatpush1.msra.mxu0 0.0
    %116 = vmatprep.subr.mxu0 0.0
    %117 = vmatpush1.msra.mxu0 0.0
    %118 = vmatprep.subr.mxu0 0.0
    %119 = vmatpush1.msra.mxu0 0.0
    %120 = vmatprep.subr.mxu0 0.0
    %121 = vmatpush1.msra.mxu0 0.0
    %122 = vmatprep.subr.mxu0 0.0
    %123 = vmatpush1.msra.mxu0 0.0
    %124 = vmatprep.subr.mxu0 0.0
    %125 = vmatpush1.msra.mxu0 0.0
    %126 = vmatprep.subr.mxu0 0.0
    %127 = vmatpush1.msra.mxu0 0.0
    %128 = vmatprep.subr.mxu0 0.0
    %129 = vmatpush1.msra.mxu0 0.0
    %130 = vmatprep.subr.mxu0 0.0
    %131 = vmatpush1.msra.mxu0 0.0
    %132 = vmatprep.subr.mxu0 0.0
    %133 = vmatpush1.msra.mxu0 0.0
    %134 = vmatprep.subr.mxu0 0.0
    %135 = vmatpush1.msra.mxu0 0.0
    %136 = vmatprep.subr.mxu0 0.0
    %137 = vmatpush1.msra.mxu0 0.0
    %138 = vmatprep.subr.mxu0 0.0
    %139 = vmatpush1.msra.mxu0 0.0
    %140 = vmatprep.subr.mxu0 0.0
    %141 = vmatpush1.msra.mxu0 %v108
    %142 = vmatprep.subr.mxu0 0.0
    %143 = vmatpush2.msra.mxu0 0.0
    %144 = vmatprep.subr.mxu0 0.0
    %145 = vmatpush2.msra.mxu0 0.0
    %146 = vmatprep.subr.mxu0 0.0
    %147 = vmatpush2.msra.mxu0 0.0
    %148 = vmatprep.subr.mxu0 0.0
    %149 = vmatpush2.msra.mxu0 0.0
    %150 = vmatprep.subr.mxu0 0.0
    %151 = vmatpush2.msra.mxu0 0.0
    %152 = vmatprep.subr.mxu0 0.0
    %153 = vmatpush2.msra.mxu0 0.0
    %154 = vmatprep.subr.mxu0 0.0
    %155 = vmatpush2.msra.mxu0 0.0
    %156 = vmatprep.subr.mxu0 0.0
    %157 = vmatpush2.msra.mxu0 0.0
    %158 = vmatprep.subr.mxu0 0.0
    %159 = vmatpush2.msra.mxu0 0.0
    %160 = vmatprep.subr.mxu0 0.0
    %161 = vmatpush2.msra.mxu0 0.0
    %162 = vmatprep.subr.mxu0 0.0
    %163 = vmatpush2.msra.mxu0 0.0
    %164 = vmatprep.subr.mxu0 0.0
    %165 = vmatpush2.msra.mxu0 0.0
    %166 = vmatprep.subr.mxu0 0.0
    %167 = vmatpush2.msra.mxu0 0.0
    %168 = vmatprep.subr.mxu0 0.0
    %169 = vmatpush2.msra.mxu0 0.0
    %170 = vmatprep.subr.mxu0 0.0
    %171 = vmatpush2.msra.mxu0 0.0
    %172 = vmatprep.subr.mxu0 0.0
    %173 = vmatpush2.msra.mxu0 0.0
    %174 = vmatprep.mubr.f32.mxu0 0.0
    %175 = vmatmul.mubr.f32.gmra.mxu0 %v83
    %v176 = vpop.f32.mrf.mxu0
    %v177 = vadd.f32 %v79, %v176
    %v178 = vpop.f32.mrf.mxu0
    %179 = vmatprep.mubr.f32.mxu0 0.0
    %180 = vmatmul.mubr.f32.gmra.mxu0 %v86
    %v181 = vpop.f32.mrf.mxu0
    %v182 = vadd.f32 %v79, %v181
    %v183 = vpop.f32.mrf.mxu0
    %184 = vmatprep.mubr.f32.mxu0 0.0
    %185 = vmatmul.mubr.f32.gmra.mxu0 %v89
    %v186 = vpop.f32.mrf.mxu0
    %v187 = vadd.f32 %v79, %v186
    %v188 = vpop.f32.mrf.mxu0
    %189 = vmatprep.mubr.f32.mxu0 0.0
    %190 = vmatmul.mubr.f32.gmra.mxu0 %v92
    %v191 = vpop.f32.mrf.mxu0
    %v192 = vadd.f32 %v79, %v191
    %v193 = vpop.f32.mrf.mxu0
    %194 = vmatprep.mubr.f32.mxu0 0.0
    %195 = vmatmul.mubr.f32.gmra.mxu0 %v95
    %v196 = vpop.f32.mrf.mxu0
    %v197 = vadd.f32 %v79, %v196
    %v198 = vpop.f32.mrf.mxu0
    %199 = vmatprep.mubr.f32.mxu0 0.0
    %200 = vmatmul.mubr.f32.gmra.mxu0 %v98
    %v201 = vpop.f32.mrf.mxu0
    %v202 = vadd.f32 %v79, %v201
    %v203 = vpop.f32.mrf.mxu0
    %204 = vmatprep.mubr.f32.mxu0 0.0
    %205 = vmatmul.mubr.f32.gmra.mxu0 %v101
    %v206 = vpop.f32.mrf.mxu0
    %v207 = vadd.f32 %v79, %v206
    %v208 = vpop.f32.mrf.mxu0
    %209 = vmatprep.mubr.f32.mxu0 0.0
    %210 = vmatmul.mubr.f32.gmra.mxu0 %v104
    %v211 = vpop.f32.mrf.mxu0
    %v212 = vadd.f32 %v79, %v211
    %v213 = vpop.f32.mrf.mxu0
    %214 = vdwg.mxu0
    %vm215 = vcmask 523264
    %v217 = vsel %vm215, 0.0, 0
    %219 = vmatprep.subr.mxu0 0.0
    %220 = vmatpush1.msra.mxu0 0.0
    %221 = vmatprep.subr.mxu0 0.0
    %222 = vmatpush1.msra.mxu0 0.0
    %223 = vmatprep.subr.mxu0 0.0
    %224 = vmatpush1.msra.mxu0 0.0
    %225 = vmatprep.subr.mxu0 0.0
    %226 = vmatpush1.msra.mxu0 0.0
    %227 = vmatprep.subr.mxu0 0.0
    %228 = vmatpush1.msra.mxu0 0.0
    %229 = vmatprep.subr.mxu0 0.0
    %230 = vmatpush1.msra.mxu0 0.0
    %231 = vmatprep.subr.mxu0 0.0
    %232 = vmatpush1.msra.mxu0 0.0
    %233 = vmatprep.subr.mxu0 0.0
    %234 = vmatpush1.msra.mxu0 0.0
    %235 = vmatprep.subr.mxu0 %v63
    %236 = vmatpush1.msra.mxu0 %v62
    %237 = vmatprep.subr.mxu0 %v61
    %238 = vmatpush1.msra.mxu0 %v60
    %239 = vmatprep.subr.mxu0 %v59
    %240 = vmatpush1.msra.mxu0 %v58
    %241 = vmatprep.subr.mxu0 %v57
    %242 = vmatpush1.msra.mxu0 %v56
    %243 = vmatprep.subr.mxu0 %v55
    %244 = vmatpush1.msra.mxu0 %v54
    %245 = vmatprep.subr.mxu0 %v53
    %246 = vmatpush1.msra.mxu0 %v52
    %247 = vmatprep.subr.mxu0 %v51
    %248 = vmatpush1.msra.mxu0 %v50
    %249 = vmatprep.subr.mxu0 %v49
    %250 = vmatpush1.msra.mxu0 %v48
    %251 = vmatprep.subr.mxu0 0.0
    %252 = vmatpush2.msra.mxu0 0.0
    %253 = vmatprep.subr.mxu0 0.0
    %254 = vmatpush2.msra.mxu0 0.0
    %255 = vmatprep.subr.mxu0 0.0
    %256 = vmatpush2.msra.mxu0 0.0
    %257 = vmatprep.subr.mxu0 0.0
    %258 = vmatpush2.msra.mxu0 0.0
    %259 = vmatprep.subr.mxu0 0.0
    %260 = vmatpush2.msra.mxu0 0.0
    %261 = vmatprep.subr.mxu0 0.0
    %262 = vmatpush2.msra.mxu0 0.0
    %263 = vmatprep.subr.mxu0 0.0
    %264 = vmatpush2.msra.mxu0 0.0
    %265 = vmatprep.subr.mxu0 0.0
    %266 = vmatpush2.msra.mxu0 0.0
    %267 = vmatprep.subr.mxu0 0.0
    %268 = vmatpush2.msra.mxu0 0.0
    %269 = vmatprep.subr.mxu0 0.0
    %270 = vmatpush2.msra.mxu0 0.0
    %271 = vmatprep.subr.mxu0 0.0
    %272 = vmatpush2.msra.mxu0 0.0
    %273 = vmatprep.subr.mxu0 0.0
    %274 = vmatpush2.msra.mxu0 0.0
    %275 = vmatprep.subr.mxu0 0.0
    %276 = vmatpush2.msra.mxu0 0.0
    %277 = vmatprep.subr.mxu0 0.0
    %278 = vmatpush2.msra.mxu0 0.0
    %279 = vmatprep.subr.mxu0 0.0
    %280 = vmatpush2.msra.mxu0 0.0
    %281 = vmatprep.subr.mxu0 0.0
    %282 = vmatpush2.msra.mxu0 0.0
    %283 = vmatprep.mubr.f32.mxu0 0.0
    %284 = vmatmul.mubr.f32.gmra.mxu0 %v217
    %v285 = vpop.f32.mrf.mxu0
    %v286 = vadd.f32 0.0, %v285
    %v287 = vpop.f32.mrf.mxu0
    %v288 = vadd.f32 0.0, %v287
    %289 = vdwg.mxu0
    %v290 = vadd.f32 %v177, %v286
    %v291 = vxor.u32 %v290, 2147483648
    %v292 = vmul.f32 %v291, 1.442695
    %v293 = vpow.pop %v292
    %v294 = vadd.f32 %v293, 1.0
    %v295 = vrcp.pop %v294
    %v296 = vmul.f32 1.0, %v295
    %v297 = vtanh.pop %v290
    %v298 = vmul.f32 %v296, 0.0
    %300 = vrot.lane.b32.xlu0 %v297, 64
    %v301 = vpop.permute.xlu0 %300
    %v303 = vmul.f32 %v296, %v301
    %305 = vrot.lane.b32.xlu0 %v303, 32
    %v306 = vpop.permute.xlu0 %305
    %v308 = vadd.f32 %v298, %v306
    %v309 = vtanh.pop %v308
    %311 = vrot.lane.b32.xlu0 %v309, 64
    %v312 = vpop.permute.xlu0 %311
    %v314 = vmul.f32 %v296, %v312
    %v316 = vlaneseq
    %v317 = vshrl.u32 %v316, 7
    %v318 = vsub.s32 0, %v317
    %v319 = vrot.slane %v64, %v318
    %322 = vrot.lane.b32.xlu0 %v314, 32
    %v323 = vpop.permute.xlu0 %322
    %vm324 = vcmask 261120
    %v325 = vsel %vm324, %v323, 0
    %327 = vmatprep.subr.mxu0 0.0
    %328 = vmatpush1.msra.mxu0 0.0
    %329 = vmatprep.subr.mxu0 0.0
    %330 = vmatpush1.msra.mxu0 0.0
    %331 = vmatprep.subr.mxu0 0.0
    %332 = vmatpush1.msra.mxu0 0.0
    %333 = vmatprep.subr.mxu0 0.0
    %334 = vmatpush1.msra.mxu0 0.0
    %335 = vmatprep.subr.mxu0 0.0
    %336 = vmatpush1.msra.mxu0 0.0
    %337 = vmatprep.subr.mxu0 0.0
    %338 = vmatpush1.msra.mxu0 0.0
    %339 = vmatprep.subr.mxu0 0.0
    %340 = vmatpush1.msra.mxu0 0.0
    %341 = vmatprep.subr.mxu0 0.0
    %342 = vmatpush1.msra.mxu0 0.0
    %343 = vmatprep.subr.mxu0 0.0
    %344 = vmatpush1.msra.mxu0 0.0
    %345 = vmatprep.subr.mxu0 0.0
    %346 = vmatpush1.msra.mxu0 0.0
    %347 = vmatprep.subr.mxu0 0.0
    %348 = vmatpush1.msra.mxu0 0.0
    %349 = vmatprep.subr.mxu0 0.0
    %350 = vmatpush1.msra.mxu0 0.0
    %351 = vmatprep.subr.mxu0 0.0
    %352 = vmatpush1.msra.mxu0 %v47
    %353 = vmatprep.subr.mxu0 0.0
    %354 = vmatpush1.msra.mxu0 %v46
    %355 = vmatprep.subr.mxu0 0.0
    %356 = vmatpush1.msra.mxu0 %v45
    %357 = vmatprep.subr.mxu0 0.0
    %358 = vmatpush1.msra.mxu0 %v44
    %359 = vmatprep.subr.mxu0 0.0
    %360 = vmatpush2.msra.mxu0 0.0
    %361 = vmatprep.subr.mxu0 0.0
    %362 = vmatpush2.msra.mxu0 0.0
    %363 = vmatprep.subr.mxu0 0.0
    %364 = vmatpush2.msra.mxu0 0.0
    %365 = vmatprep.subr.mxu0 0.0
    %366 = vmatpush2.msra.mxu0 0.0
    %367 = vmatprep.subr.mxu0 0.0
    %368 = vmatpush2.msra.mxu0 0.0
    %369 = vmatprep.subr.mxu0 0.0
    %370 = vmatpush2.msra.mxu0 0.0
    %371 = vmatprep.subr.mxu0 0.0
    %372 = vmatpush2.msra.mxu0 0.0
    %373 = vmatprep.subr.mxu0 0.0
    %374 = vmatpush2.msra.mxu0 0.0
    %375 = vmatprep.subr.mxu0 0.0
    %376 = vmatpush2.msra.mxu0 0.0
    %377 = vmatprep.subr.mxu0 0.0
    %378 = vmatpush2.msra.mxu0 0.0
    %379 = vmatprep.subr.mxu0 0.0
    %380 = vmatpush2.msra.mxu0 0.0
    %381 = vmatprep.subr.mxu0 0.0
    %382 = vmatpush2.msra.mxu0 0.0
    %383 = vmatprep.subr.mxu0 0.0
    %384 = vmatpush2.msra.mxu0 0.0
    %385 = vmatprep.subr.mxu0 0.0
    %386 = vmatpush2.msra.mxu0 0.0
    %387 = vmatprep.subr.mxu0 0.0
    %388 = vmatpush2.msra.mxu0 0.0
    %389 = vmatprep.subr.mxu0 0.0
    %390 = vmatpush2.msra.mxu0 0.0
    %391 = vmatprep.mubr.f32.mxu0 0.0
    %392 = vmatmul.mubr.f32.gmra.mxu0 %v325
    %v393 = vpop.f32.mrf.mxu0
    %v394 = vadd.f32 %v319, %v393
    %v395 = vpop.f32.mrf.mxu0
    %396 = vdwg.mxu0
    %v397 = vadd.f32 %v394, %v288
    %v398 = vxor.u32 %v397, 2147483648
    %v399 = vmul.f32 %v398, 1.442695
    %v400 = vpow.pop %v399
    %v401 = vadd.f32 %v400, 1.0
    %v402 = vrcp.pop %v401
    %v403 = vmul.f32 1.0, %v402
    %v404 = vtanh.pop %v397
    %v405 = vmul.f32 %v403, 0.0
    %407 = vrot.lane.b32.xlu0 %v404, 64
    %v408 = vpop.permute.xlu0 %407
    %v410 = vmul.f32 %v403, %v408
    %412 = vrot.lane.b32.xlu0 %v410, 32
    %v413 = vpop.permute.xlu0 %412
    %v415 = vadd.f32 %v405, %v413
    %v416 = vtanh.pop %v415
    %418 = vrot.lane.b32.xlu0 %v416, 64
    %v419 = vpop.permute.xlu0 %418
    %v421 = vmul.f32 %v403, %v419
    %424 = vrot.lane.b32.xlu0 %v421, 64
    %v425 = vpop.permute.xlu0 %424
    %v427 = vsel %vm324, %v323, %v425
    %v429 = vsel %vm215, %v427, 0
    %431 = vmatprep.subr.mxu0 0.0
    %432 = vmatpush1.msra.mxu0 0.0
    %433 = vmatprep.subr.mxu0 0.0
    %434 = vmatpush1.msra.mxu0 0.0
    %435 = vmatprep.subr.mxu0 0.0
    %436 = vmatpush1.msra.mxu0 0.0
    %437 = vmatprep.subr.mxu0 0.0
    %438 = vmatpush1.msra.mxu0 0.0
    %439 = vmatprep.subr.mxu0 0.0
    %440 = vmatpush1.msra.mxu0 0.0
    %441 = vmatprep.subr.mxu0 0.0
    %442 = vmatpush1.msra.mxu0 0.0
    %443 = vmatprep.subr.mxu0 0.0
    %444 = vmatpush1.msra.mxu0 0.0
    %445 = vmatprep.subr.mxu0 0.0
    %446 = vmatpush1.msra.mxu0 0.0
    %447 = vmatprep.subr.mxu0 %v63
    %448 = vmatpush1.msra.mxu0 %v62
    %449 = vmatprep.subr.mxu0 %v61
    %450 = vmatpush1.msra.mxu0 %v60
    %451 = vmatprep.subr.mxu0 %v59
    %452 = vmatpush1.msra.mxu0 %v58
    %453 = vmatprep.subr.mxu0 %v57
    %454 = vmatpush1.msra.mxu0 %v56
    %455 = vmatprep.subr.mxu0 %v55
    %456 = vmatpush1.msra.mxu0 %v54
    %457 = vmatprep.subr.mxu0 %v53
    %458 = vmatpush1.msra.mxu0 %v52
    %459 = vmatprep.subr.mxu0 %v51
    %460 = vmatpush1.msra.mxu0 %v50
    %461 = vmatprep.subr.mxu0 %v49
    %462 = vmatpush1.msra.mxu0 %v48
    %463 = vmatprep.subr.mxu0 0.0
    %464 = vmatpush2.msra.mxu0 0.0
    %465 = vmatprep.subr.mxu0 0.0
    %466 = vmatpush2.msra.mxu0 0.0
    %467 = vmatprep.subr.mxu0 0.0
    %468 = vmatpush2.msra.mxu0 0.0
    %469 = vmatprep.subr.mxu0 0.0
    %470 = vmatpush2.msra.mxu0 0.0
    %471 = vmatprep.subr.mxu0 0.0
    %472 = vmatpush2.msra.mxu0 0.0
    %473 = vmatprep.subr.mxu0 0.0
    %474 = vmatpush2.msra.mxu0 0.0
    %475 = vmatprep.subr.mxu0 0.0
    %476 = vmatpush2.msra.mxu0 0.0
    %477 = vmatprep.subr.mxu0 0.0
    %478 = vmatpush2.msra.mxu0 0.0
    %479 = vmatprep.subr.mxu0 0.0
    %480 = vmatpush2.msra.mxu0 0.0
    %481 = vmatprep.subr.mxu0 0.0
    %482 = vmatpush2.msra.mxu0 0.0
    %483 = vmatprep.subr.mxu0 0.0
    %484 = vmatpush2.msra.mxu0 0.0
    %485 = vmatprep.subr.mxu0 0.0
    %486 = vmatpush2.msra.mxu0 0.0
    %487 = vmatprep.subr.mxu0 0.0
    %488 = vmatpush2.msra.mxu0 0.0
    %489 = vmatprep.subr.mxu0 0.0
    %490 = vmatpush2.msra.mxu0 0.0
    %491 = vmatprep.subr.mxu0 0.0
    %492 = vmatpush2.msra.mxu0 0.0
    %493 = vmatprep.subr.mxu0 0.0
    %494 = vmatpush2.msra.mxu0 0.0
    %495 = vmatprep.mubr.f32.mxu0 0.0
    %496 = vmatmul.mubr.f32.gmra.mxu0 %v429
    %v497 = vpop.f32.mrf.mxu0
    %v498 = vadd.f32 0.0, %v497
    %v499 = vpop.f32.mrf.mxu0
    %v500 = vadd.f32 0.0, %v499
    %501 = vdwg.mxu0
    %v502 = vadd.f32 %v182, %v498
    %v503 = vxor.u32 %v502, 2147483648
    %v504 = vmul.f32 %v503, 1.442695
    %v505 = vpow.pop %v504
    %v506 = vadd.f32 %v505, 1.0
    %v507 = vrcp.pop %v506
    %v508 = vmul.f32 1.0, %v507
    %v509 = vtanh.pop %v502
    %v510 = vmul.f32 %v508, %v308
    %512 = vrot.lane.b32.xlu0 %v509, 64
    %v513 = vpop.permute.xlu0 %512
    %v515 = vmul.f32 %v508, %v513
    %517 = vrot.lane.b32.xlu0 %v515, 32
    %v518 = vpop.permute.xlu0 %517
    %v520 = vadd.f32 %v510, %v518
    %v521 = vtanh.pop %v520
    %523 = vrot.lane.b32.xlu0 %v521, 64
    %v524 = vpop.permute.xlu0 %523
    %v526 = vmul.f32 %v508, %v524
    %528 = vrot.lane.b32.xlu0 %v526, 32
    %v529 = vpop.permute.xlu0 %528
    %v530 = vsel %vm324, %v529, 0
    %532 = vmatprep.subr.mxu0 0.0
    %533 = vmatpush1.msra.mxu0 0.0
    %534 = vmatprep.subr.mxu0 0.0
    %535 = vmatpush1.msra.mxu0 0.0
    %536 = vmatprep.subr.mxu0 0.0
    %537 = vmatpush1.msra.mxu0 0.0
    %538 = vmatprep.subr.mxu0 0.0
    %539 = vmatpush1.msra.mxu0 0.0
    %540 = vmatprep.subr.mxu0 0.0
    %541 = vmatpush1.msra.mxu0 0.0
    %542 = vmatprep.subr.mxu0 0.0
    %543 = vmatpush1.msra.mxu0 0.0
    %544 = vmatprep.subr.mxu0 0.0
    %545 = vmatpush1.msra.mxu0 0.0
    %546 = vmatprep.subr.mxu0 0.0
    %547 = vmatpush1.msra.mxu0 0.0
    %548 = vmatprep.subr.mxu0 0.0
    %549 = vmatpush1.msra.mxu0 0.0
    %550 = vmatprep.subr.mxu0 0.0
    %551 = vmatpush1.msra.mxu0 0.0
    %552 = vmatprep.subr.mxu0 0.0
    %553 = vmatpush1.msra.mxu0 0.0
    %554 = vmatprep.subr.mxu0 0.0
    %555 = vmatpush1.msra.mxu0 0.0
    %556 = vmatprep.subr.mxu0 0.0
    %557 = vmatpush1.msra.mxu0 %v47
    %558 = vmatprep.subr.mxu0 0.0
    %559 = vmatpush1.msra.mxu0 %v46
    %560 = vmatprep.subr.mxu0 0.0
    %561 = vmatpush1.msra.mxu0 %v45
    %562 = vmatprep.subr.mxu0 0.0
    %563 = vmatpush1.msra.mxu0 %v44
    %564 = vmatprep.subr.mxu0 0.0
    %565 = vmatpush2.msra.mxu0 0.0
    %566 = vmatprep.subr.mxu0 0.0
    %567 = vmatpush2.msra.mxu0 0.0
    %568 = vmatprep.subr.mxu0 0.0
    %569 = vmatpush2.msra.mxu0 0.0
    %570 = vmatprep.subr.mxu0 0.0
    %571 = vmatpush2.msra.mxu0 0.0
    %572 = vmatprep.subr.mxu0 0.0
    %573 = vmatpush2.msra.mxu0 0.0
    %574 = vmatprep.subr.mxu0 0.0
    %575 = vmatpush2.msra.mxu0 0.0
    %576 = vmatprep.subr.mxu0 0.0
    %577 = vmatpush2.msra.mxu0 0.0
    %578 = vmatprep.subr.mxu0 0.0
    %579 = vmatpush2.msra.mxu0 0.0
    %580 = vmatprep.subr.mxu0 0.0
    %581 = vmatpush2.msra.mxu0 0.0
    %582 = vmatprep.subr.mxu0 0.0
    %583 = vmatpush2.msra.mxu0 0.0
    %584 = vmatprep.subr.mxu0 0.0
    %585 = vmatpush2.msra.mxu0 0.0
    %586 = vmatprep.subr.mxu0 0.0
    %587 = vmatpush2.msra.mxu0 0.0
    %588 = vmatprep.subr.mxu0 0.0
    %589 = vmatpush2.msra.mxu0 0.0
    %590 = vmatprep.subr.mxu0 0.0
    %591 = vmatpush2.msra.mxu0 0.0
    %592 = vmatprep.subr.mxu0 0.0
    %593 = vmatpush2.msra.mxu0 0.0
    %594 = vmatprep.subr.mxu0 0.0
    %595 = vmatpush2.msra.mxu0 0.0
    %596 = vmatprep.mubr.f32.mxu0 0.0
    %597 = vmatmul.mubr.f32.gmra.mxu0 %v530
    %v598 = vpop.f32.mrf.mxu0
    %v599 = vadd.f32 %v319, %v598
    %v600 = vpop.f32.mrf.mxu0
    %601 = vdwg.mxu0
    %v602 = vadd.f32 %v599, %v500
    %v603 = vxor.u32 %v602, 2147483648
    %v604 = vmul.f32 %v603, 1.442695
    %v605 = vpow.pop %v604
    %v606 = vadd.f32 %v605, 1.0
    %v607 = vrcp.pop %v606
    %v608 = vmul.f32 1.0, %v607
    %v609 = vtanh.pop %v602
    %v610 = vmul.f32 %v608, %v415
    %612 = vrot.lane.b32.xlu0 %v609, 64
    %v613 = vpop.permute.xlu0 %612
    %v615 = vmul.f32 %v608, %v613
    %617 = vrot.lane.b32.xlu0 %v615, 32
    %v618 = vpop.permute.xlu0 %617
    %v620 = vadd.f32 %v610, %v618
    %v621 = vtanh.pop %v620
    %623 = vrot.lane.b32.xlu0 %v621, 64
    %v624 = vpop.permute.xlu0 %623
    %v626 = vmul.f32 %v608, %v624
    %629 = vrot.lane.b32.xlu0 %v626, 64
    %v630 = vpop.permute.xlu0 %629
    %v632 = vsel %vm324, %v529, %v630
    %v634 = vsel %vm215, %v632, 0
    %636 = vmatprep.subr.mxu0 0.0
    %637 = vmatpush1.msra.mxu0 0.0
    %638 = vmatprep.subr.mxu0 0.0
    %639 = vmatpush1.msra.mxu0 0.0
    %640 = vmatprep.subr.mxu0 0.0
    %641 = vmatpush1.msra.mxu0 0.0
    %642 = vmatprep.subr.mxu0 0.0
    %643 = vmatpush1.msra.mxu0 0.0
    %644 = vmatprep.subr.mxu0 0.0
    %645 = vmatpush1.msra.mxu0 0.0
    %646 = vmatprep.subr.mxu0 0.0
    %647 = vmatpush1.msra.mxu0 0.0
    %648 = vmatprep.subr.mxu0 0.0
    %649 = vmatpush1.msra.mxu0 0.0
    %650 = vmatprep.subr.mxu0 0.0
    %651 = vmatpush1.msra.mxu0 0.0
    %652 = vmatprep.subr.mxu0 %v63
    %653 = vmatpush1.msra.mxu0 %v62
    %654 = vmatprep.subr.mxu0 %v61
    %655 = vmatpush1.msra.mxu0 %v60
    %656 = vmatprep.subr.mxu0 %v59
    %657 = vmatpush1.msra.mxu0 %v58
    %658 = vmatprep.subr.mxu0 %v57
    %659 = vmatpush1.msra.mxu0 %v56
    %660 = vmatprep.subr.mxu0 %v55
    %661 = vmatpush1.msra.mxu0 %v54
    %662 = vmatprep.subr.mxu0 %v53
    %663 = vmatpush1.msra.mxu0 %v52
    %664 = vmatprep.subr.mxu0 %v51
    %665 = vmatpush1.msra.mxu0 %v50
    %666 = vmatprep.subr.mxu0 %v49
    %667 = vmatpush1.msra.mxu0 %v48
    %668 = vmatprep.subr.mxu0 0.0
    %669 = vmatpush2.msra.mxu0 0.0
    %670 = vmatprep.subr.mxu0 0.0
    %671 = vmatpush2.msra.mxu0 0.0
    %672 = vmatprep.subr.mxu0 0.0
    %673 = vmatpush2.msra.mxu0 0.0
    %674 = vmatprep.subr.mxu0 0.0
    %675 = vmatpush2.msra.mxu0 0.0
    %676 = vmatprep.subr.mxu0 0.0
    %677 = vmatpush2.msra.mxu0 0.0
    %678 = vmatprep.subr.mxu0 0.0
    %679 = vmatpush2.msra.mxu0 0.0
    %680 = vmatprep.subr.mxu0 0.0
    %681 = vmatpush2.msra.mxu0 0.0
    %682 = vmatprep.subr.mxu0 0.0
    %683 = vmatpush2.msra.mxu0 0.0
    %684 = vmatprep.subr.mxu0 0.0
    %685 = vmatpush2.msra.mxu0 0.0
    %686 = vmatprep.subr.mxu0 0.0
    %687 = vmatpush2.msra.mxu0 0.0
    %688 = vmatprep.subr.mxu0 0.0
    %689 = vmatpush2.msra.mxu0 0.0
    %690 = vmatprep.subr.mxu0 0.0
    %691 = vmatpush2.msra.mxu0 0.0
    %692 = vmatprep.subr.mxu0 0.0
    %693 = vmatpush2.msra.mxu0 0.0
    %694 = vmatprep.subr.mxu0 0.0
    %695 = vmatpush2.msra.mxu0 0.0
    %696 = vmatprep.subr.mxu0 0.0
    %697 = vmatpush2.msra.mxu0 0.0
    %698 = vmatprep.subr.mxu0 0.0
    %699 = vmatpush2.msra.mxu0 0.0
    %700 = vmatprep.mubr.f32.mxu0 0.0
    %701 = vmatmul.mubr.f32.gmra.mxu0 %v634
    %v702 = vpop.f32.mrf.mxu0
    %v703 = vadd.f32 0.0, %v702
    %v704 = vpop.f32.mrf.mxu0
    %v705 = vadd.f32 0.0, %v704
    %706 = vdwg.mxu0
    %v707 = vadd.f32 %v187, %v703
    %v708 = vxor.u32 %v707, 2147483648
    %v709 = vmul.f32 %v708, 1.442695
    %v710 = vpow.pop %v709
    %v711 = vadd.f32 %v710, 1.0
    %v712 = vrcp.pop %v711
    %v713 = vmul.f32 1.0, %v712
    %v714 = vtanh.pop %v707
    %v715 = vmul.f32 %v713, %v520
    %717 = vrot.lane.b32.xlu0 %v714, 64
    %v718 = vpop.permute.xlu0 %717
    %v720 = vmul.f32 %v713, %v718
    %722 = vrot.lane.b32.xlu0 %v720, 32
    %v723 = vpop.permute.xlu0 %722
    %v725 = vadd.f32 %v715, %v723
    %v726 = vtanh.pop %v725
    %728 = vrot.lane.b32.xlu0 %v726, 64
    %v729 = vpop.permute.xlu0 %728
    %v731 = vmul.f32 %v713, %v729
    %733 = vrot.lane.b32.xlu0 %v731, 32
    %v734 = vpop.permute.xlu0 %733
    %v735 = vsel %vm324, %v734, 0
    %737 = vmatprep.subr.mxu0 0.0
    %738 = vmatpush1.msra.mxu0 0.0
    %739 = vmatprep.subr.mxu0 0.0
    %740 = vmatpush1.msra.mxu0 0.0
    %741 = vmatprep.subr.mxu0 0.0
    %742 = vmatpush1.msra.mxu0 0.0
    %743 = vmatprep.subr.mxu0 0.0
    %744 = vmatpush1.msra.mxu0 0.0
    %745 = vmatprep.subr.mxu0 0.0
    %746 = vmatpush1.msra.mxu0 0.0
    %747 = vmatprep.subr.mxu0 0.0
    %748 = vmatpush1.msra.mxu0 0.0
    %749 = vmatprep.subr.mxu0 0.0
    %750 = vmatpush1.msra.mxu0 0.0
    %751 = vmatprep.subr.mxu0 0.0
    %752 = vmatpush1.msra.mxu0 0.0
    %753 = vmatprep.subr.mxu0 0.0
    %754 = vmatpush1.msra.mxu0 0.0
    %755 = vmatprep.subr.mxu0 0.0
    %756 = vmatpush1.msra.mxu0 0.0
    %757 = vmatprep.subr.mxu0 0.0
    %758 = vmatpush1.msra.mxu0 0.0
    %759 = vmatprep.subr.mxu0 0.0
    %760 = vmatpush1.msra.mxu0 0.0
    %761 = vmatprep.subr.mxu0 0.0
    %762 = vmatpush1.msra.mxu0 %v47
    %763 = vmatprep.subr.mxu0 0.0
    %764 = vmatpush1.msra.mxu0 %v46
    %765 = vmatprep.subr.mxu0 0.0
    %766 = vmatpush1.msra.mxu0 %v45
    %767 = vmatprep.subr.mxu0 0.0
    %768 = vmatpush1.msra.mxu0 %v44
    %769 = vmatprep.subr.mxu0 0.0
    %770 = vmatpush2.msra.mxu0 0.0
    %771 = vmatprep.subr.mxu0 0.0
    %772 = vmatpush2.msra.mxu0 0.0
    %773 = vmatprep.subr.mxu0 0.0
    %774 = vmatpush2.msra.mxu0 0.0
    %775 = vmatprep.subr.mxu0 0.0
    %776 = vmatpush2.msra.mxu0 0.0
    %777 = vmatprep.subr.mxu0 0.0
    %778 = vmatpush2.msra.mxu0 0.0
    %779 = vmatprep.subr.mxu0 0.0
    %780 = vmatpush2.msra.mxu0 0.0
    %781 = vmatprep.subr.mxu0 0.0
    %782 = vmatpush2.msra.mxu0 0.0
    %783 = vmatprep.subr.mxu0 0.0
    %784 = vmatpush2.msra.mxu0 0.0
    %785 = vmatprep.subr.mxu0 0.0
    %786 = vmatpush2.msra.mxu0 0.0
    %787 = vmatprep.subr.mxu0 0.0
    %788 = vmatpush2.msra.mxu0 0.0
    %789 = vmatprep.subr.mxu0 0.0
    %790 = vmatpush2.msra.mxu0 0.0
    %791 = vmatprep.subr.mxu0 0.0
    %792 = vmatpush2.msra.mxu0 0.0
    %793 = vmatprep.subr.mxu0 0.0
    %794 = vmatpush2.msra.mxu0 0.0
    %795 = vmatprep.subr.mxu0 0.0
    %796 = vmatpush2.msra.mxu0 0.0
    %797 = vmatprep.subr.mxu0 0.0
    %798 = vmatpush2.msra.mxu0 0.0
    %799 = vmatprep.subr.mxu0 0.0
    %800 = vmatpush2.msra.mxu0 0.0
    %801 = vmatprep.mubr.f32.mxu0 0.0
    %802 = vmatmul.mubr.f32.gmra.mxu0 %v735
    %v803 = vpop.f32.mrf.mxu0
    %v804 = vadd.f32 %v319, %v803
    %v805 = vpop.f32.mrf.mxu0
    %806 = vdwg.mxu0
    %v807 = vadd.f32 %v804, %v705
    %v808 = vxor.u32 %v807, 2147483648
    %v809 = vmul.f32 %v808, 1.442695
    %v810 = vpow.pop %v809
    %v811 = vadd.f32 %v810, 1.0
    %v812 = vrcp.pop %v811
    %v813 = vmul.f32 1.0, %v812
    %v814 = vtanh.pop %v807
    %v815 = vmul.f32 %v813, %v620
    %817 = vrot.lane.b32.xlu0 %v814, 64
    %v818 = vpop.permute.xlu0 %817
    %v820 = vmul.f32 %v813, %v818
    %822 = vrot.lane.b32.xlu0 %v820, 32
    %v823 = vpop.permute.xlu0 %822
    %v825 = vadd.f32 %v815, %v823
    %v826 = vtanh.pop %v825
    %828 = vrot.lane.b32.xlu0 %v826, 64
    %v829 = vpop.permute.xlu0 %828
    %v831 = vmul.f32 %v813, %v829
    %834 = vrot.lane.b32.xlu0 %v831, 64
    %v835 = vpop.permute.xlu0 %834
    %v837 = vsel %vm324, %v734, %v835
    %v839 = vsel %vm215, %v837, 0
    %841 = vmatprep.subr.mxu0 0.0
    %842 = vmatpush1.msra.mxu0 0.0
    %843 = vmatprep.subr.mxu0 0.0
    %844 = vmatpush1.msra.mxu0 0.0
    %845 = vmatprep.subr.mxu0 0.0
    %846 = vmatpush1.msra.mxu0 0.0
    %847 = vmatprep.subr.mxu0 0.0
    %848 = vmatpush1.msra.mxu0 0.0
    %849 = vmatprep.subr.mxu0 0.0
    %850 = vmatpush1.msra.mxu0 0.0
    %851 = vmatprep.subr.mxu0 0.0
    %852 = vmatpush1.msra.mxu0 0.0
    %853 = vmatprep.subr.mxu0 0.0
    %854 = vmatpush1.msra.mxu0 0.0
    %855 = vmatprep.subr.mxu0 0.0
    %856 = vmatpush1.msra.mxu0 0.0
    %857 = vmatprep.subr.mxu0 %v63
    %858 = vmatpush1.msra.mxu0 %v62
    %859 = vmatprep.subr.mxu0 %v61
    %860 = vmatpush1.msra.mxu0 %v60
    %861 = vmatprep.subr.mxu0 %v59
    %862 = vmatpush1.msra.mxu0 %v58
    %863 = vmatprep.subr.mxu0 %v57
    %864 = vmatpush1.msra.mxu0 %v56
    %865 = vmatprep.subr.mxu0 %v55
    %866 = vmatpush1.msra.mxu0 %v54
    %867 = vmatprep.subr.mxu0 %v53
    %868 = vmatpush1.msra.mxu0 %v52
    %869 = vmatprep.subr.mxu0 %v51
    %870 = vmatpush1.msra.mxu0 %v50
    %871 = vmatprep.subr.mxu0 %v49
    %872 = vmatpush1.msra.mxu0 %v48
    %873 = vmatprep.subr.mxu0 0.0
    %874 = vmatpush2.msra.mxu0 0.0
    %875 = vmatprep.subr.mxu0 0.0
    %876 = vmatpush2.msra.mxu0 0.0
    %877 = vmatprep.subr.mxu0 0.0
    %878 = vmatpush2.msra.mxu0 0.0
    %879 = vmatprep.subr.mxu0 0.0
    %880 = vmatpush2.msra.mxu0 0.0
    %881 = vmatprep.subr.mxu0 0.0
    %882 = vmatpush2.msra.mxu0 0.0
    %883 = vmatprep.subr.mxu0 0.0
    %884 = vmatpush2.msra.mxu0 0.0
    %885 = vmatprep.subr.mxu0 0.0
    %886 = vmatpush2.msra.mxu0 0.0
    %887 = vmatprep.subr.mxu0 0.0
    %888 = vmatpush2.msra.mxu0 0.0
    %889 = vmatprep.subr.mxu0 0.0
    %890 = vmatpush2.msra.mxu0 0.0
    %891 = vmatprep.subr.mxu0 0.0
    %892 = vmatpush2.msra.mxu0 0.0
    %893 = vmatprep.subr.mxu0 0.0
    %894 = vmatpush2.msra.mxu0 0.0
    %895 = vmatprep.subr.mxu0 0.0
    %896 = vmatpush2.msra.mxu0 0.0
    %897 = vmatprep.subr.mxu0 0.0
    %898 = vmatpush2.msra.mxu0 0.0
    %899 = vmatprep.subr.mxu0 0.0
    %900 = vmatpush2.msra.mxu0 0.0
    %901 = vmatprep.subr.mxu0 0.0
    %902 = vmatpush2.msra.mxu0 0.0
    %903 = vmatprep.subr.mxu0 0.0
    %904 = vmatpush2.msra.mxu0 0.0
    %905 = vmatprep.mubr.f32.mxu0 0.0
    %906 = vmatmul.mubr.f32.gmra.mxu0 %v839
    %v907 = vpop.f32.mrf.mxu0
    %v908 = vadd.f32 0.0, %v907
    %v909 = vpop.f32.mrf.mxu0
    %v910 = vadd.f32 0.0, %v909
    %911 = vdwg.mxu0
    %v912 = vadd.f32 %v192, %v908
    %v913 = vxor.u32 %v912, 2147483648
    %v914 = vmul.f32 %v913, 1.442695
    %v915 = vpow.pop %v914
    %v916 = vadd.f32 %v915, 1.0
    %v917 = vrcp.pop %v916
    %v918 = vmul.f32 1.0, %v917
    %v919 = vtanh.pop %v912
    %v920 = vmul.f32 %v918, %v725
    %922 = vrot.lane.b32.xlu0 %v919, 64
    %v923 = vpop.permute.xlu0 %922
    %v925 = vmul.f32 %v918, %v923
    %927 = vrot.lane.b32.xlu0 %v925, 32
    %v928 = vpop.permute.xlu0 %927
    %v930 = vadd.f32 %v920, %v928
    %v931 = vtanh.pop %v930
    %933 = vrot.lane.b32.xlu0 %v931, 64
    %v934 = vpop.permute.xlu0 %933
    %v936 = vmul.f32 %v918, %v934
    %938 = vrot.lane.b32.xlu0 %v936, 32
    %v939 = vpop.permute.xlu0 %938
    %v940 = vsel %vm324, %v939, 0
    %942 = vmatprep.subr.mxu0 0.0
    %943 = vmatpush1.msra.mxu0 0.0
    %944 = vmatprep.subr.mxu0 0.0
    %945 = vmatpush1.msra.mxu0 0.0
    %946 = vmatprep.subr.mxu0 0.0
    %947 = vmatpush1.msra.mxu0 0.0
    %948 = vmatprep.subr.mxu0 0.0
    %949 = vmatpush1.msra.mxu0 0.0
    %950 = vmatprep.subr.mxu0 0.0
    %951 = vmatpush1.msra.mxu0 0.0
    %952 = vmatprep.subr.mxu0 0.0
    %953 = vmatpush1.msra.mxu0 0.0
    %954 = vmatprep.subr.mxu0 0.0
    %955 = vmatpush1.msra.mxu0 0.0
    %956 = vmatprep.subr.mxu0 0.0
    %957 = vmatpush1.msra.mxu0 0.0
    %958 = vmatprep.subr.mxu0 0.0
    %959 = vmatpush1.msra.mxu0 0.0
    %960 = vmatprep.subr.mxu0 0.0
    %961 = vmatpush1.msra.mxu0 0.0
    %962 = vmatprep.subr.mxu0 0.0
    %963 = vmatpush1.msra.mxu0 0.0
    %964 = vmatprep.subr.mxu0 0.0
    %965 = vmatpush1.msra.mxu0 0.0
    %966 = vmatprep.subr.mxu0 0.0
    %967 = vmatpush1.msra.mxu0 %v47
    %968 = vmatprep.subr.mxu0 0.0
    %969 = vmatpush1.msra.mxu0 %v46
    %970 = vmatprep.subr.mxu0 0.0
    %971 = vmatpush1.msra.mxu0 %v45
    %972 = vmatprep.subr.mxu0 0.0
    %973 = vmatpush1.msra.mxu0 %v44
    %974 = vmatprep.subr.mxu0 0.0
    %975 = vmatpush2.msra.mxu0 0.0
    %976 = vmatprep.subr.mxu0 0.0
    %977 = vmatpush2.msra.mxu0 0.0
    %978 = vmatprep.subr.mxu0 0.0
    %979 = vmatpush2.msra.mxu0 0.0
    %980 = vmatprep.subr.mxu0 0.0
    %981 = vmatpush2.msra.mxu0 0.0
    %982 = vmatprep.subr.mxu0 0.0
    %983 = vmatpush2.msra.mxu0 0.0
    %984 = vmatprep.subr.mxu0 0.0
    %985 = vmatpush2.msra.mxu0 0.0
    %986 = vmatprep.subr.mxu0 0.0
    %987 = vmatpush2.msra.mxu0 0.0
    %988 = vmatprep.subr.mxu0 0.0
    %989 = vmatpush2.msra.mxu0 0.0
    %990 = vmatprep.subr.mxu0 0.0
    %991 = vmatpush2.msra.mxu0 0.0
    %992 = vmatprep.subr.mxu0 0.0
    %993 = vmatpush2.msra.mxu0 0.0
    %994 = vmatprep.subr.mxu0 0.0
    %995 = vmatpush2.msra.mxu0 0.0
    %996 = vmatprep.subr.mxu0 0.0
    %997 = vmatpush2.msra.mxu0 0.0
    %998 = vmatprep.subr.mxu0 0.0
    %999 = vmatpush2.msra.mxu0 0.0
    %1000 = vmatprep.subr.mxu0 0.0
    %1001 = vmatpush2.msra.mxu0 0.0
    %1002 = vmatprep.subr.mxu0 0.0
    %1003 = vmatpush2.msra.mxu0 0.0
    %1004 = vmatprep.subr.mxu0 0.0
    %1005 = vmatpush2.msra.mxu0 0.0
    %1006 = vmatprep.mubr.f32.mxu0 0.0
    %1007 = vmatmul.mubr.f32.gmra.mxu0 %v940
    %v1008 = vpop.f32.mrf.mxu0
    %v1009 = vadd.f32 %v319, %v1008
    %v1010 = vpop.f32.mrf.mxu0
    %1011 = vdwg.mxu0
    %v1012 = vadd.f32 %v1009, %v910
    %v1013 = vxor.u32 %v1012, 2147483648
    %v1014 = vmul.f32 %v1013, 1.442695
    %v1015 = vpow.pop %v1014
    %v1016 = vadd.f32 %v1015, 1.0
    %v1017 = vrcp.pop %v1016
    %v1018 = vmul.f32 1.0, %v1017
    %v1019 = vtanh.pop %v1012
    %v1020 = vmul.f32 %v1018, %v825
    %1022 = vrot.lane.b32.xlu0 %v1019, 64
    %v1023 = vpop.permute.xlu0 %1022
    %v1025 = vmul.f32 %v1018, %v1023
    %1027 = vrot.lane.b32.xlu0 %v1025, 32
    %v1028 = vpop.permute.xlu0 %1027
    %v1030 = vadd.f32 %v1020, %v1028
    %v1031 = vtanh.pop %v1030
    %1033 = vrot.lane.b32.xlu0 %v1031, 64
    %v1034 = vpop.permute.xlu0 %1033
    %v1036 = vmul.f32 %v1018, %v1034
    %1039 = vrot.lane.b32.xlu0 %v1036, 64
    %v1040 = vpop.permute.xlu0 %1039
    %v1042 = vsel %vm324, %v939, %v1040
    %v1044 = vsel %vm215, %v1042, 0
    %1046 = vmatprep.subr.mxu0 0.0
    %1047 = vmatpush1.msra.mxu0 0.0
    %1048 = vmatprep.subr.mxu0 0.0
    %1049 = vmatpush1.msra.mxu0 0.0
    %1050 = vmatprep.subr.mxu0 0.0
    %1051 = vmatpush1.msra.mxu0 0.0
    %1052 = vmatprep.subr.mxu0 0.0
    %1053 = vmatpush1.msra.mxu0 0.0
    %1054 = vmatprep.subr.mxu0 0.0
    %1055 = vmatpush1.msra.mxu0 0.0
    %1056 = vmatprep.subr.mxu0 0.0
    %1057 = vmatpush1.msra.mxu0 0.0
    %1058 = vmatprep.subr.mxu0 0.0
    %1059 = vmatpush1.msra.mxu0 0.0
    %1060 = vmatprep.subr.mxu0 0.0
    %1061 = vmatpush1.msra.mxu0 0.0
    %1062 = vmatprep.subr.mxu0 %v63
    %1063 = vmatpush1.msra.mxu0 %v62
    %1064 = vmatprep.subr.mxu0 %v61
    %1065 = vmatpush1.msra.mxu0 %v60
    %1066 = vmatprep.subr.mxu0 %v59
    %1067 = vmatpush1.msra.mxu0 %v58
    %1068 = vmatprep.subr.mxu0 %v57
    %1069 = vmatpush1.msra.mxu0 %v56
    %1070 = vmatprep.subr.mxu0 %v55
    %1071 = vmatpush1.msra.mxu0 %v54
    %1072 = vmatprep.subr.mxu0 %v53
    %1073 = vmatpush1.msra.mxu0 %v52
    %1074 = vmatprep.subr.mxu0 %v51
    %1075 = vmatpush1.msra.mxu0 %v50
    %1076 = vmatprep.subr.mxu0 %v49
    %1077 = vmatpush1.msra.mxu0 %v48
    %1078 = vmatprep.subr.mxu0 0.0
    %1079 = vmatpush2.msra.mxu0 0.0
    %1080 = vmatprep.subr.mxu0 0.0
    %1081 = vmatpush2.msra.mxu0 0.0
    %1082 = vmatprep.subr.mxu0 0.0
    %1083 = vmatpush2.msra.mxu0 0.0
    %1084 = vmatprep.subr.mxu0 0.0
    %1085 = vmatpush2.msra.mxu0 0.0
    %1086 = vmatprep.subr.mxu0 0.0
    %1087 = vmatpush2.msra.mxu0 0.0
    %1088 = vmatprep.subr.mxu0 0.0
    %1089 = vmatpush2.msra.mxu0 0.0
    %1090 = vmatprep.subr.mxu0 0.0
    %1091 = vmatpush2.msra.mxu0 0.0
    %1092 = vmatprep.subr.mxu0 0.0
    %1093 = vmatpush2.msra.mxu0 0.0
    %1094 = vmatprep.subr.mxu0 0.0
    %1095 = vmatpush2.msra.mxu0 0.0
    %1096 = vmatprep.subr.mxu0 0.0
    %1097 = vmatpush2.msra.mxu0 0.0
    %1098 = vmatprep.subr.mxu0 0.0
    %1099 = vmatpush2.msra.mxu0 0.0
    %1100 = vmatprep.subr.mxu0 0.0
    %1101 = vmatpush2.msra.mxu0 0.0
    %1102 = vmatprep.subr.mxu0 0.0
    %1103 = vmatpush2.msra.mxu0 0.0
    %1104 = vmatprep.subr.mxu0 0.0
    %1105 = vmatpush2.msra.mxu0 0.0
    %1106 = vmatprep.subr.mxu0 0.0
    %1107 = vmatpush2.msra.mxu0 0.0
    %1108 = vmatprep.subr.mxu0 0.0
    %1109 = vmatpush2.msra.mxu0 0.0
    %1110 = vmatprep.mubr.f32.mxu0 0.0
    %1111 = vmatmul.mubr.f32.gmra.mxu0 %v1044
    %v1112 = vpop.f32.mrf.mxu0
    %v1113 = vadd.f32 0.0, %v1112
    %v1114 = vpop.f32.mrf.mxu0
    %v1115 = vadd.f32 0.0, %v1114
    %1116 = vdwg.mxu0
    %v1117 = vadd.f32 %v197, %v1113
    %v1118 = vxor.u32 %v1117, 2147483648
    %v1119 = vmul.f32 %v1118, 1.442695
    %v1120 = vpow.pop %v1119
    %v1121 = vadd.f32 %v1120, 1.0
    %v1122 = vrcp.pop %v1121
    %v1123 = vmul.f32 1.0, %v1122
    %v1124 = vtanh.pop %v1117
    %v1125 = vmul.f32 %v1123, %v930
    %1127 = vrot.lane.b32.xlu0 %v1124, 64
    %v1128 = vpop.permute.xlu0 %1127
    %v1130 = vmul.f32 %v1123, %v1128
    %1132 = vrot.lane.b32.xlu0 %v1130, 32
    %v1133 = vpop.permute.xlu0 %1132
    %v1135 = vadd.f32 %v1125, %v1133
    %v1136 = vtanh.pop %v1135
    %1138 = vrot.lane.b32.xlu0 %v1136, 64
    %v1139 = vpop.permute.xlu0 %1138
    %v1141 = vmul.f32 %v1123, %v1139
    %1143 = vrot.lane.b32.xlu0 %v1141, 32
    %v1144 = vpop.permute.xlu0 %1143
    %v1145 = vsel %vm324, %v1144, 0
    %1147 = vmatprep.subr.mxu0 0.0
    %1148 = vmatpush1.msra.mxu0 0.0
    %1149 = vmatprep.subr.mxu0 0.0
    %1150 = vmatpush1.msra.mxu0 0.0
    %1151 = vmatprep.subr.mxu0 0.0
    %1152 = vmatpush1.msra.mxu0 0.0
    %1153 = vmatprep.subr.mxu0 0.0
    %1154 = vmatpush1.msra.mxu0 0.0
    %1155 = vmatprep.subr.mxu0 0.0
    %1156 = vmatpush1.msra.mxu0 0.0
    %1157 = vmatprep.subr.mxu0 0.0
    %1158 = vmatpush1.msra.mxu0 0.0
    %1159 = vmatprep.subr.mxu0 0.0
    %1160 = vmatpush1.msra.mxu0 0.0
    %1161 = vmatprep.subr.mxu0 0.0
    %1162 = vmatpush1.msra.mxu0 0.0
    %1163 = vmatprep.subr.mxu0 0.0
    %1164 = vmatpush1.msra.mxu0 0.0
    %1165 = vmatprep.subr.mxu0 0.0
    %1166 = vmatpush1.msra.mxu0 0.0
    %1167 = vmatprep.subr.mxu0 0.0
    %1168 = vmatpush1.msra.mxu0 0.0
    %1169 = vmatprep.subr.mxu0 0.0
    %1170 = vmatpush1.msra.mxu0 0.0
    %1171 = vmatprep.subr.mxu0 0.0
    %1172 = vmatpush1.msra.mxu0 %v47
    %1173 = vmatprep.subr.mxu0 0.0
    %1174 = vmatpush1.msra.mxu0 %v46
    %1175 = vmatprep.subr.mxu0 0.0
    %1176 = vmatpush1.msra.mxu0 %v45
    %1177 = vmatprep.subr.mxu0 0.0
    %1178 = vmatpush1.msra.mxu0 %v44
    %1179 = vmatprep.subr.mxu0 0.0
    %1180 = vmatpush2.msra.mxu0 0.0
    %1181 = vmatprep.subr.mxu0 0.0
    %1182 = vmatpush2.msra.mxu0 0.0
    %1183 = vmatprep.subr.mxu0 0.0
    %1184 = vmatpush2.msra.mxu0 0.0
    %1185 = vmatprep.subr.mxu0 0.0
    %1186 = vmatpush2.msra.mxu0 0.0
    %1187 = vmatprep.subr.mxu0 0.0
    %1188 = vmatpush2.msra.mxu0 0.0
    %1189 = vmatprep.subr.mxu0 0.0
    %1190 = vmatpush2.msra.mxu0 0.0
    %1191 = vmatprep.subr.mxu0 0.0
    %1192 = vmatpush2.msra.mxu0 0.0
    %1193 = vmatprep.subr.mxu0 0.0
    %1194 = vmatpush2.msra.mxu0 0.0
    %1195 = vmatprep.subr.mxu0 0.0
    %1196 = vmatpush2.msra.mxu0 0.0
    %1197 = vmatprep.subr.mxu0 0.0
    %1198 = vmatpush2.msra.mxu0 0.0
    %1199 = vmatprep.subr.mxu0 0.0
    %1200 = vmatpush2.msra.mxu0 0.0
    %1201 = vmatprep.subr.mxu0 0.0
    %1202 = vmatpush2.msra.mxu0 0.0
    %1203 = vmatprep.subr.mxu0 0.0
    %1204 = vmatpush2.msra.mxu0 0.0
    %1205 = vmatprep.subr.mxu0 0.0
    %1206 = vmatpush2.msra.mxu0 0.0
    %1207 = vmatprep.subr.mxu0 0.0
    %1208 = vmatpush2.msra.mxu0 0.0
    %1209 = vmatprep.subr.mxu0 0.0
    %1210 = vmatpush2.msra.mxu0 0.0
    %1211 = vmatprep.mubr.f32.mxu0 0.0
    %1212 = vmatmul.mubr.f32.gmra.mxu0 %v1145
    %v1213 = vpop.f32.mrf.mxu0
    %v1214 = vadd.f32 %v319, %v1213
    %v1215 = vpop.f32.mrf.mxu0
    %1216 = vdwg.mxu0
    %v1217 = vadd.f32 %v1214, %v1115
    %v1218 = vxor.u32 %v1217, 2147483648
    %v1219 = vmul.f32 %v1218, 1.442695
    %v1220 = vpow.pop %v1219
    %v1221 = vadd.f32 %v1220, 1.0
    %v1222 = vrcp.pop %v1221
    %v1223 = vmul.f32 1.0, %v1222
    %v1224 = vtanh.pop %v1217
    %v1225 = vmul.f32 %v1223, %v1030
    %1227 = vrot.lane.b32.xlu0 %v1224, 64
    %v1228 = vpop.permute.xlu0 %1227
    %v1230 = vmul.f32 %v1223, %v1228
    %1232 = vrot.lane.b32.xlu0 %v1230, 32
    %v1233 = vpop.permute.xlu0 %1232
    %v1235 = vadd.f32 %v1225, %v1233
    %v1236 = vtanh.pop %v1235
    %1238 = vrot.lane.b32.xlu0 %v1236, 64
    %v1239 = vpop.permute.xlu0 %1238
    %v1241 = vmul.f32 %v1223, %v1239
    %1244 = vrot.lane.b32.xlu0 %v1241, 64
    %v1245 = vpop.permute.xlu0 %1244
    %v1247 = vsel %vm324, %v1144, %v1245
    %v1249 = vsel %vm215, %v1247, 0
    %1251 = vmatprep.subr.mxu0 0.0
    %1252 = vmatpush1.msra.mxu0 0.0
    %1253 = vmatprep.subr.mxu0 0.0
    %1254 = vmatpush1.msra.mxu0 0.0
    %1255 = vmatprep.subr.mxu0 0.0
    %1256 = vmatpush1.msra.mxu0 0.0
    %1257 = vmatprep.subr.mxu0 0.0
    %1258 = vmatpush1.msra.mxu0 0.0
    %1259 = vmatprep.subr.mxu0 0.0
    %1260 = vmatpush1.msra.mxu0 0.0
    %1261 = vmatprep.subr.mxu0 0.0
    %1262 = vmatpush1.msra.mxu0 0.0
    %1263 = vmatprep.subr.mxu0 0.0
    %1264 = vmatpush1.msra.mxu0 0.0
    %1265 = vmatprep.subr.mxu0 0.0
    %1266 = vmatpush1.msra.mxu0 0.0
    %1267 = vmatprep.subr.mxu0 %v63
    %1268 = vmatpush1.msra.mxu0 %v62
    %1269 = vmatprep.subr.mxu0 %v61
    %1270 = vmatpush1.msra.mxu0 %v60
    %1271 = vmatprep.subr.mxu0 %v59
    %1272 = vmatpush1.msra.mxu0 %v58
    %1273 = vmatprep.subr.mxu0 %v57
    %1274 = vmatpush1.msra.mxu0 %v56
    %1275 = vmatprep.subr.mxu0 %v55
    %1276 = vmatpush1.msra.mxu0 %v54
    %1277 = vmatprep.subr.mxu0 %v53
    %1278 = vmatpush1.msra.mxu0 %v52
    %1279 = vmatprep.subr.mxu0 %v51
    %1280 = vmatpush1.msra.mxu0 %v50
    %1281 = vmatprep.subr.mxu0 %v49
    %1282 = vmatpush1.msra.mxu0 %v48
    %1283 = vmatprep.subr.mxu0 0.0
    %1284 = vmatpush2.msra.mxu0 0.0
    %1285 = vmatprep.subr.mxu0 0.0
    %1286 = vmatpush2.msra.mxu0 0.0
    %1287 = vmatprep.subr.mxu0 0.0
    %1288 = vmatpush2.msra.mxu0 0.0
    %1289 = vmatprep.subr.mxu0 0.0
    %1290 = vmatpush2.msra.mxu0 0.0
    %1291 = vmatprep.subr.mxu0 0.0
    %1292 = vmatpush2.msra.mxu0 0.0
    %1293 = vmatprep.subr.mxu0 0.0
    %1294 = vmatpush2.msra.mxu0 0.0
    %1295 = vmatprep.subr.mxu0 0.0
    %1296 = vmatpush2.msra.mxu0 0.0
    %1297 = vmatprep.subr.mxu0 0.0
    %1298 = vmatpush2.msra.mxu0 0.0
    %1299 = vmatprep.subr.mxu0 0.0
    %1300 = vmatpush2.msra.mxu0 0.0
    %1301 = vmatprep.subr.mxu0 0.0
    %1302 = vmatpush2.msra.mxu0 0.0
    %1303 = vmatprep.subr.mxu0 0.0
    %1304 = vmatpush2.msra.mxu0 0.0
    %1305 = vmatprep.subr.mxu0 0.0
    %1306 = vmatpush2.msra.mxu0 0.0
    %1307 = vmatprep.subr.mxu0 0.0
    %1308 = vmatpush2.msra.mxu0 0.0
    %1309 = vmatprep.subr.mxu0 0.0
    %1310 = vmatpush2.msra.mxu0 0.0
    %1311 = vmatprep.subr.mxu0 0.0
    %1312 = vmatpush2.msra.mxu0 0.0
    %1313 = vmatprep.subr.mxu0 0.0
    %1314 = vmatpush2.msra.mxu0 0.0
    %1315 = vmatprep.mubr.f32.mxu0 0.0
    %1316 = vmatmul.mubr.f32.gmra.mxu0 %v1249
    %v1317 = vpop.f32.mrf.mxu0
    %v1318 = vadd.f32 0.0, %v1317
    %v1319 = vpop.f32.mrf.mxu0
    %v1320 = vadd.f32 0.0, %v1319
    %1321 = vdwg.mxu0
    %v1322 = vadd.f32 %v202, %v1318
    %v1323 = vxor.u32 %v1322, 2147483648
    %v1324 = vmul.f32 %v1323, 1.442695
    %v1325 = vpow.pop %v1324
    %v1326 = vadd.f32 %v1325, 1.0
    %v1327 = vrcp.pop %v1326
    %v1328 = vmul.f32 1.0, %v1327
    %v1329 = vtanh.pop %v1322
    %v1330 = vmul.f32 %v1328, %v1135
    %1332 = vrot.lane.b32.xlu0 %v1329, 64
    %v1333 = vpop.permute.xlu0 %1332
    %v1335 = vmul.f32 %v1328, %v1333
    %1337 = vrot.lane.b32.xlu0 %v1335, 32
    %v1338 = vpop.permute.xlu0 %1337
    %v1340 = vadd.f32 %v1330, %v1338
    %v1341 = vtanh.pop %v1340
    %1343 = vrot.lane.b32.xlu0 %v1341, 64
    %v1344 = vpop.permute.xlu0 %1343
    %v1346 = vmul.f32 %v1328, %v1344
    %1348 = vrot.lane.b32.xlu0 %v1346, 32
    %v1349 = vpop.permute.xlu0 %1348
    %v1350 = vsel %vm324, %v1349, 0
    %1352 = vmatprep.subr.mxu0 0.0
    %1353 = vmatpush1.msra.mxu0 0.0
    %1354 = vmatprep.subr.mxu0 0.0
    %1355 = vmatpush1.msra.mxu0 0.0
    %1356 = vmatprep.subr.mxu0 0.0
    %1357 = vmatpush1.msra.mxu0 0.0
    %1358 = vmatprep.subr.mxu0 0.0
    %1359 = vmatpush1.msra.mxu0 0.0
    %1360 = vmatprep.subr.mxu0 0.0
    %1361 = vmatpush1.msra.mxu0 0.0
    %1362 = vmatprep.subr.mxu0 0.0
    %1363 = vmatpush1.msra.mxu0 0.0
    %1364 = vmatprep.subr.mxu0 0.0
    %1365 = vmatpush1.msra.mxu0 0.0
    %1366 = vmatprep.subr.mxu0 0.0
    %1367 = vmatpush1.msra.mxu0 0.0
    %1368 = vmatprep.subr.mxu0 0.0
    %1369 = vmatpush1.msra.mxu0 0.0
    %1370 = vmatprep.subr.mxu0 0.0
    %1371 = vmatpush1.msra.mxu0 0.0
    %1372 = vmatprep.subr.mxu0 0.0
    %1373 = vmatpush1.msra.mxu0 0.0
    %1374 = vmatprep.subr.mxu0 0.0
    %1375 = vmatpush1.msra.mxu0 0.0
    %1376 = vmatprep.subr.mxu0 0.0
    %1377 = vmatpush1.msra.mxu0 %v47
    %1378 = vmatprep.subr.mxu0 0.0
    %1379 = vmatpush1.msra.mxu0 %v46
    %1380 = vmatprep.subr.mxu0 0.0
    %1381 = vmatpush1.msra.mxu0 %v45
    %1382 = vmatprep.subr.mxu0 0.0
    %1383 = vmatpush1.msra.mxu0 %v44
    %1384 = vmatprep.subr.mxu0 0.0
    %1385 = vmatpush2.msra.mxu0 0.0
    %1386 = vmatprep.subr.mxu0 0.0
    %1387 = vmatpush2.msra.mxu0 0.0
    %1388 = vmatprep.subr.mxu0 0.0
    %1389 = vmatpush2.msra.mxu0 0.0
    %1390 = vmatprep.subr.mxu0 0.0
    %1391 = vmatpush2.msra.mxu0 0.0
    %1392 = vmatprep.subr.mxu0 0.0
    %1393 = vmatpush2.msra.mxu0 0.0
    %1394 = vmatprep.subr.mxu0 0.0
    %1395 = vmatpush2.msra.mxu0 0.0
    %1396 = vmatprep.subr.mxu0 0.0
    %1397 = vmatpush2.msra.mxu0 0.0
    %1398 = vmatprep.subr.mxu0 0.0
    %1399 = vmatpush2.msra.mxu0 0.0
    %1400 = vmatprep.subr.mxu0 0.0
    %1401 = vmatpush2.msra.mxu0 0.0
    %1402 = vmatprep.subr.mxu0 0.0
    %1403 = vmatpush2.msra.mxu0 0.0
    %1404 = vmatprep.subr.mxu0 0.0
    %1405 = vmatpush2.msra.mxu0 0.0
    %1406 = vmatprep.subr.mxu0 0.0
    %1407 = vmatpush2.msra.mxu0 0.0
    %1408 = vmatprep.subr.mxu0 0.0
    %1409 = vmatpush2.msra.mxu0 0.0
    %1410 = vmatprep.subr.mxu0 0.0
    %1411 = vmatpush2.msra.mxu0 0.0
    %1412 = vmatprep.subr.mxu0 0.0
    %1413 = vmatpush2.msra.mxu0 0.0
    %1414 = vmatprep.subr.mxu0 0.0
    %1415 = vmatpush2.msra.mxu0 0.0
    %1416 = vmatprep.mubr.f32.mxu0 0.0
    %1417 = vmatmul.mubr.f32.gmra.mxu0 %v1350
    %v1418 = vpop.f32.mrf.mxu0
    %v1419 = vadd.f32 %v319, %v1418
    %v1420 = vpop.f32.mrf.mxu0
    %1421 = vdwg.mxu0
    %v1422 = vadd.f32 %v1419, %v1320
    %v1423 = vxor.u32 %v1422, 2147483648
    %v1424 = vmul.f32 %v1423, 1.442695
    %v1425 = vpow.pop %v1424
    %v1426 = vadd.f32 %v1425, 1.0
    %v1427 = vrcp.pop %v1426
    %v1428 = vmul.f32 1.0, %v1427
    %v1429 = vtanh.pop %v1422
    %v1430 = vmul.f32 %v1428, %v1235
    %1432 = vrot.lane.b32.xlu0 %v1429, 64
    %v1433 = vpop.permute.xlu0 %1432
    %v1435 = vmul.f32 %v1428, %v1433
    %1437 = vrot.lane.b32.xlu0 %v1435, 32
    %v1438 = vpop.permute.xlu0 %1437
    %v1440 = vadd.f32 %v1430, %v1438
    %v1441 = vtanh.pop %v1440
    %1443 = vrot.lane.b32.xlu0 %v1441, 64
    %v1444 = vpop.permute.xlu0 %1443
    %v1446 = vmul.f32 %v1428, %v1444
    %1449 = vrot.lane.b32.xlu0 %v1446, 64
    %v1450 = vpop.permute.xlu0 %1449
    %v1452 = vsel %vm324, %v1349, %v1450
    %v1454 = vsel %vm215, %v1452, 0
    %1456 = vmatprep.subr.mxu0 0.0
    %1457 = vmatpush1.msra.mxu0 0.0
    %1458 = vmatprep.subr.mxu0 0.0
    %1459 = vmatpush1.msra.mxu0 0.0
    %1460 = vmatprep.subr.mxu0 0.0
    %1461 = vmatpush1.msra.mxu0 0.0
    %1462 = vmatprep.subr.mxu0 0.0
    %1463 = vmatpush1.msra.mxu0 0.0
    %1464 = vmatprep.subr.mxu0 0.0
    %1465 = vmatpush1.msra.mxu0 0.0
    %1466 = vmatprep.subr.mxu0 0.0
    %1467 = vmatpush1.msra.mxu0 0.0
    %1468 = vmatprep.subr.mxu0 0.0
    %1469 = vmatpush1.msra.mxu0 0.0
    %1470 = vmatprep.subr.mxu0 0.0
    %1471 = vmatpush1.msra.mxu0 0.0
    %1472 = vmatprep.subr.mxu0 %v63
    %1473 = vmatpush1.msra.mxu0 %v62
    %1474 = vmatprep.subr.mxu0 %v61
    %1475 = vmatpush1.msra.mxu0 %v60
    %1476 = vmatprep.subr.mxu0 %v59
    %1477 = vmatpush1.msra.mxu0 %v58
    %1478 = vmatprep.subr.mxu0 %v57
    %1479 = vmatpush1.msra.mxu0 %v56
    %1480 = vmatprep.subr.mxu0 %v55
    %1481 = vmatpush1.msra.mxu0 %v54
    %1482 = vmatprep.subr.mxu0 %v53
    %1483 = vmatpush1.msra.mxu0 %v52
    %1484 = vmatprep.subr.mxu0 %v51
    %1485 = vmatpush1.msra.mxu0 %v50
    %1486 = vmatprep.subr.mxu0 %v49
    %1487 = vmatpush1.msra.mxu0 %v48
    %1488 = vmatprep.subr.mxu0 0.0
    %1489 = vmatpush2.msra.mxu0 0.0
    %1490 = vmatprep.subr.mxu0 0.0
    %1491 = vmatpush2.msra.mxu0 0.0
    %1492 = vmatprep.subr.mxu0 0.0
    %1493 = vmatpush2.msra.mxu0 0.0
    %1494 = vmatprep.subr.mxu0 0.0
    %1495 = vmatpush2.msra.mxu0 0.0
    %1496 = vmatprep.subr.mxu0 0.0
    %1497 = vmatpush2.msra.mxu0 0.0
    %1498 = vmatprep.subr.mxu0 0.0
    %1499 = vmatpush2.msra.mxu0 0.0
    %1500 = vmatprep.subr.mxu0 0.0
    %1501 = vmatpush2.msra.mxu0 0.0
    %1502 = vmatprep.subr.mxu0 0.0
    %1503 = vmatpush2.msra.mxu0 0.0
    %1504 = vmatprep.subr.mxu0 0.0
    %1505 = vmatpush2.msra.mxu0 0.0
    %1506 = vmatprep.subr.mxu0 0.0
    %1507 = vmatpush2.msra.mxu0 0.0
    %1508 = vmatprep.subr.mxu0 0.0
    %1509 = vmatpush2.msra.mxu0 0.0
    %1510 = vmatprep.subr.mxu0 0.0
    %1511 = vmatpush2.msra.mxu0 0.0
    %1512 = vmatprep.subr.mxu0 0.0
    %1513 = vmatpush2.msra.mxu0 0.0
    %1514 = vmatprep.subr.mxu0 0.0
    %1515 = vmatpush2.msra.mxu0 0.0
    %1516 = vmatprep.subr.mxu0 0.0
    %1517 = vmatpush2.msra.mxu0 0.0
    %1518 = vmatprep.subr.mxu0 0.0
    %1519 = vmatpush2.msra.mxu0 0.0
    %1520 = vmatprep.mubr.f32.mxu0 0.0
    %1521 = vmatmul.mubr.f32.gmra.mxu0 %v1454
    %v1522 = vpop.f32.mrf.mxu0
    %v1523 = vadd.f32 0.0, %v1522
    %v1524 = vpop.f32.mrf.mxu0
    %v1525 = vadd.f32 0.0, %v1524
    %1526 = vdwg.mxu0
    %v1527 = vadd.f32 %v207, %v1523
    %v1528 = vxor.u32 %v1527, 2147483648
    %v1529 = vmul.f32 %v1528, 1.442695
    %v1530 = vpow.pop %v1529
    %v1531 = vadd.f32 %v1530, 1.0
    %v1532 = vrcp.pop %v1531
    %v1533 = vmul.f32 1.0, %v1532
    %v1534 = vtanh.pop %v1527
    %v1535 = vmul.f32 %v1533, %v1340
    %1537 = vrot.lane.b32.xlu0 %v1534, 64
    %v1538 = vpop.permute.xlu0 %1537
    %v1540 = vmul.f32 %v1533, %v1538
    %1542 = vrot.lane.b32.xlu0 %v1540, 32
    %v1543 = vpop.permute.xlu0 %1542
    %v1545 = vadd.f32 %v1535, %v1543
    %v1546 = vtanh.pop %v1545
    %1548 = vrot.lane.b32.xlu0 %v1546, 64
    %v1549 = vpop.permute.xlu0 %1548
    %v1551 = vmul.f32 %v1533, %v1549
    %1553 = vrot.lane.b32.xlu0 %v1551, 32
    %v1554 = vpop.permute.xlu0 %1553
    %v1555 = vsel %vm324, %v1554, 0
    %1557 = vmatprep.subr.mxu0 0.0
    %1558 = vmatpush1.msra.mxu0 0.0
    %1559 = vmatprep.subr.mxu0 0.0
    %1560 = vmatpush1.msra.mxu0 0.0
    %1561 = vmatprep.subr.mxu0 0.0
    %1562 = vmatpush1.msra.mxu0 0.0
    %1563 = vmatprep.subr.mxu0 0.0
    %1564 = vmatpush1.msra.mxu0 0.0
    %1565 = vmatprep.subr.mxu0 0.0
    %1566 = vmatpush1.msra.mxu0 0.0
    %1567 = vmatprep.subr.mxu0 0.0
    %1568 = vmatpush1.msra.mxu0 0.0
    %1569 = vmatprep.subr.mxu0 0.0
    %1570 = vmatpush1.msra.mxu0 0.0
    %1571 = vmatprep.subr.mxu0 0.0
    %1572 = vmatpush1.msra.mxu0 0.0
    %1573 = vmatprep.subr.mxu0 0.0
    %1574 = vmatpush1.msra.mxu0 0.0
    %1575 = vmatprep.subr.mxu0 0.0
    %1576 = vmatpush1.msra.mxu0 0.0
    %1577 = vmatprep.subr.mxu0 0.0
    %1578 = vmatpush1.msra.mxu0 0.0
    %1579 = vmatprep.subr.mxu0 0.0
    %1580 = vmatpush1.msra.mxu0 0.0
    %1581 = vmatprep.subr.mxu0 0.0
    %1582 = vmatpush1.msra.mxu0 %v47
    %1583 = vmatprep.subr.mxu0 0.0
    %1584 = vmatpush1.msra.mxu0 %v46
    %1585 = vmatprep.subr.mxu0 0.0
    %1586 = vmatpush1.msra.mxu0 %v45
    %1587 = vmatprep.subr.mxu0 0.0
    %1588 = vmatpush1.msra.mxu0 %v44
    %1589 = vmatprep.subr.mxu0 0.0
    %1590 = vmatpush2.msra.mxu0 0.0
    %1591 = vmatprep.subr.mxu0 0.0
    %1592 = vmatpush2.msra.mxu0 0.0
    %1593 = vmatprep.subr.mxu0 0.0
    %1594 = vmatpush2.msra.mxu0 0.0
    %1595 = vmatprep.subr.mxu0 0.0
    %1596 = vmatpush2.msra.mxu0 0.0
    %1597 = vmatprep.subr.mxu0 0.0
    %1598 = vmatpush2.msra.mxu0 0.0
    %1599 = vmatprep.subr.mxu0 0.0
    %1600 = vmatpush2.msra.mxu0 0.0
    %1601 = vmatprep.subr.mxu0 0.0
    %1602 = vmatpush2.msra.mxu0 0.0
    %1603 = vmatprep.subr.mxu0 0.0
    %1604 = vmatpush2.msra.mxu0 0.0
    %1605 = vmatprep.subr.mxu0 0.0
    %1606 = vmatpush2.msra.mxu0 0.0
    %1607 = vmatprep.subr.mxu0 0.0
    %1608 = vmatpush2.msra.mxu0 0.0
    %1609 = vmatprep.subr.mxu0 0.0
    %1610 = vmatpush2.msra.mxu0 0.0
    %1611 = vmatprep.subr.mxu0 0.0
    %1612 = vmatpush2.msra.mxu0 0.0
    %1613 = vmatprep.subr.mxu0 0.0
    %1614 = vmatpush2.msra.mxu0 0.0
    %1615 = vmatprep.subr.mxu0 0.0
    %1616 = vmatpush2.msra.mxu0 0.0
    %1617 = vmatprep.subr.mxu0 0.0
    %1618 = vmatpush2.msra.mxu0 0.0
    %1619 = vmatprep.subr.mxu0 0.0
    %1620 = vmatpush2.msra.mxu0 0.0
    %1621 = vmatprep.mubr.f32.mxu0 0.0
    %1622 = vmatmul.mubr.f32.gmra.mxu0 %v1555
    %v1623 = vpop.f32.mrf.mxu0
    %v1624 = vadd.f32 %v319, %v1623
    %v1625 = vpop.f32.mrf.mxu0
    %1626 = vdwg.mxu0
    %v1627 = vadd.f32 %v1624, %v1525
    %v1628 = vxor.u32 %v1627, 2147483648
    %v1629 = vmul.f32 %v1628, 1.442695
    %v1630 = vpow.pop %v1629
    %v1631 = vadd.f32 %v1630, 1.0
    %v1632 = vrcp.pop %v1631
    %v1633 = vmul.f32 1.0, %v1632
    %v1634 = vtanh.pop %v1627
    %v1635 = vmul.f32 %v1633, %v1440
    %1637 = vrot.lane.b32.xlu0 %v1634, 64
    %v1638 = vpop.permute.xlu0 %1637
    %v1640 = vmul.f32 %v1633, %v1638
    %1642 = vrot.lane.b32.xlu0 %v1640, 32
    %v1643 = vpop.permute.xlu0 %1642
    %v1645 = vadd.f32 %v1635, %v1643
    %v1646 = vtanh.pop %v1645
    %1648 = vrot.lane.b32.xlu0 %v1646, 64
    %v1649 = vpop.permute.xlu0 %1648
    %v1651 = vmul.f32 %v1633, %v1649
    %1654 = vrot.lane.b32.xlu0 %v1651, 64
    %v1655 = vpop.permute.xlu0 %1654
    %v1657 = vsel %vm324, %v1554, %v1655
    %v1659 = vsel %vm215, %v1657, 0
    %1661 = vmatprep.subr.mxu0 0.0
    %1662 = vmatpush1.msra.mxu0 0.0
    %1663 = vmatprep.subr.mxu0 0.0
    %1664 = vmatpush1.msra.mxu0 0.0
    %1665 = vmatprep.subr.mxu0 0.0
    %1666 = vmatpush1.msra.mxu0 0.0
    %1667 = vmatprep.subr.mxu0 0.0
    %1668 = vmatpush1.msra.mxu0 0.0
    %1669 = vmatprep.subr.mxu0 0.0
    %1670 = vmatpush1.msra.mxu0 0.0
    %1671 = vmatprep.subr.mxu0 0.0
    %1672 = vmatpush1.msra.mxu0 0.0
    %1673 = vmatprep.subr.mxu0 0.0
    %1674 = vmatpush1.msra.mxu0 0.0
    %1675 = vmatprep.subr.mxu0 0.0
    %1676 = vmatpush1.msra.mxu0 0.0
    %1677 = vmatprep.subr.mxu0 %v63
    %1678 = vmatpush1.msra.mxu0 %v62
    %1679 = vmatprep.subr.mxu0 %v61
    %1680 = vmatpush1.msra.mxu0 %v60
    %1681 = vmatprep.subr.mxu0 %v59
    %1682 = vmatpush1.msra.mxu0 %v58
    %1683 = vmatprep.subr.mxu0 %v57
    %1684 = vmatpush1.msra.mxu0 %v56
    %1685 = vmatprep.subr.mxu0 %v55
    %1686 = vmatpush1.msra.mxu0 %v54
    %1687 = vmatprep.subr.mxu0 %v53
    %1688 = vmatpush1.msra.mxu0 %v52
    %1689 = vmatprep.subr.mxu0 %v51
    %1690 = vmatpush1.msra.mxu0 %v50
    %1691 = vmatprep.subr.mxu0 %v49
    %1692 = vmatpush1.msra.mxu0 %v48
    %1693 = vmatprep.subr.mxu0 0.0
    %1694 = vmatpush2.msra.mxu0 0.0
    %1695 = vmatprep.subr.mxu0 0.0
    %1696 = vmatpush2.msra.mxu0 0.0
    %1697 = vmatprep.subr.mxu0 0.0
    %1698 = vmatpush2.msra.mxu0 0.0
    %1699 = vmatprep.subr.mxu0 0.0
    %1700 = vmatpush2.msra.mxu0 0.0
    %1701 = vmatprep.subr.mxu0 0.0
    %1702 = vmatpush2.msra.mxu0 0.0
    %1703 = vmatprep.subr.mxu0 0.0
    %1704 = vmatpush2.msra.mxu0 0.0
    %1705 = vmatprep.subr.mxu0 0.0
    %1706 = vmatpush2.msra.mxu0 0.0
    %1707 = vmatprep.subr.mxu0 0.0
    %1708 = vmatpush2.msra.mxu0 0.0
    %1709 = vmatprep.subr.mxu0 0.0
    %1710 = vmatpush2.msra.mxu0 0.0
    %1711 = vmatprep.subr.mxu0 0.0
    %1712 = vmatpush2.msra.mxu0 0.0
    %1713 = vmatprep.subr.mxu0 0.0
    %1714 = vmatpush2.msra.mxu0 0.0
    %1715 = vmatprep.subr.mxu0 0.0
    %1716 = vmatpush2.msra.mxu0 0.0
    %1717 = vmatprep.subr.mxu0 0.0
    %1718 = vmatpush2.msra.mxu0 0.0
    %1719 = vmatprep.subr.mxu0 0.0
    %1720 = vmatpush2.msra.mxu0 0.0
    %1721 = vmatprep.subr.mxu0 0.0
    %1722 = vmatpush2.msra.mxu0 0.0
    %1723 = vmatprep.subr.mxu0 0.0
    %1724 = vmatpush2.msra.mxu0 0.0
    %1725 = vmatprep.mubr.f32.mxu0 0.0
    %1726 = vmatmul.mubr.f32.gmra.mxu0 %v1659
    %v1727 = vpop.f32.mrf.mxu0
    %v1728 = vadd.f32 0.0, %v1727
    %v1729 = vpop.f32.mrf.mxu0
    %v1730 = vadd.f32 0.0, %v1729
    %1731 = vdwg.mxu0
    %v1732 = vadd.f32 %v212, %v1728
    %v1733 = vxor.u32 %v1732, 2147483648
    %v1734 = vmul.f32 %v1733, 1.442695
    %v1735 = vpow.pop %v1734
    %v1736 = vadd.f32 %v1735, 1.0
    %v1737 = vrcp.pop %v1736
    %v1738 = vmul.f32 1.0, %v1737
    %v1739 = vtanh.pop %v1732
    %v1740 = vmul.f32 %v1738, %v1545
    %1742 = vrot.lane.b32.xlu0 %v1739, 64
    %v1743 = vpop.permute.xlu0 %1742
    %v1745 = vmul.f32 %v1738, %v1743
    %1747 = vrot.lane.b32.xlu0 %v1745, 32
    %v1748 = vpop.permute.xlu0 %1747
    %v1750 = vadd.f32 %v1740, %v1748
    %v1751 = vtanh.pop %v1750
    %1753 = vrot.lane.b32.xlu0 %v1751, 64
    %v1754 = vpop.permute.xlu0 %1753
    %v1756 = vmul.f32 %v1738, %v1754
    %1758 = vrot.lane.b32.xlu0 %v1756, 32
    %v1759 = vpop.permute.xlu0 %1758
    %v1760 = vsel %vm324, %v1759, 0
    %1762 = vmatprep.subr.mxu0 0.0
    %1763 = vmatpush1.msra.mxu0 0.0
    %1764 = vmatprep.subr.mxu0 0.0
    %1765 = vmatpush1.msra.mxu0 0.0
    %1766 = vmatprep.subr.mxu0 0.0
    %1767 = vmatpush1.msra.mxu0 0.0
    %1768 = vmatprep.subr.mxu0 0.0
    %1769 = vmatpush1.msra.mxu0 0.0
    %1770 = vmatprep.subr.mxu0 0.0
    %1771 = vmatpush1.msra.mxu0 0.0
    %1772 = vmatprep.subr.mxu0 0.0
    %1773 = vmatpush1.msra.mxu0 0.0
    %1774 = vmatprep.subr.mxu0 0.0
    %1775 = vmatpush1.msra.mxu0 0.0
    %1776 = vmatprep.subr.mxu0 0.0
    %1777 = vmatpush1.msra.mxu0 0.0
    %1778 = vmatprep.subr.mxu0 0.0
    %1779 = vmatpush1.msra.mxu0 0.0
    %1780 = vmatprep.subr.mxu0 0.0
    %1781 = vmatpush1.msra.mxu0 0.0
    %1782 = vmatprep.subr.mxu0 0.0
    %1783 = vmatpush1.msra.mxu0 0.0
    %1784 = vmatprep.subr.mxu0 0.0
    %1785 = vmatpush1.msra.mxu0 0.0
    %1786 = vmatprep.subr.mxu0 0.0
    %1787 = vmatpush1.msra.mxu0 %v47
    %1788 = vmatprep.subr.mxu0 0.0
    %1789 = vmatpush1.msra.mxu0 %v46
    %1790 = vmatprep.subr.mxu0 0.0
    %1791 = vmatpush1.msra.mxu0 %v45
    %1792 = vmatprep.subr.mxu0 0.0
    %1793 = vmatpush1.msra.mxu0 %v44
    %1794 = vmatprep.subr.mxu0 0.0
    %1795 = vmatpush2.msra.mxu0 0.0
    %1796 = vmatprep.subr.mxu0 0.0
    %1797 = vmatpush2.msra.mxu0 0.0
    %1798 = vmatprep.subr.mxu0 0.0
    %1799 = vmatpush2.msra.mxu0 0.0
    %1800 = vmatprep.subr.mxu0 0.0
    %1801 = vmatpush2.msra.mxu0 0.0
    %1802 = vmatprep.subr.mxu0 0.0
    %1803 = vmatpush2.msra.mxu0 0.0
    %1804 = vmatprep.subr.mxu0 0.0
    %1805 = vmatpush2.msra.mxu0 0.0
    %1806 = vmatprep.subr.mxu0 0.0
    %1807 = vmatpush2.msra.mxu0 0.0
    %1808 = vmatprep.subr.mxu0 0.0
    %1809 = vmatpush2.msra.mxu0 0.0
    %1810 = vmatprep.subr.mxu0 0.0
    %1811 = vmatpush2.msra.mxu0 0.0
    %1812 = vmatprep.subr.mxu0 0.0
    %1813 = vmatpush2.msra.mxu0 0.0
    %1814 = vmatprep.subr.mxu0 0.0
    %1815 = vmatpush2.msra.mxu0 0.0
    %1816 = vmatprep.subr.mxu0 0.0
    %1817 = vmatpush2.msra.mxu0 0.0
    %1818 = vmatprep.subr.mxu0 0.0
    %1819 = vmatpush2.msra.mxu0 0.0
    %1820 = vmatprep.subr.mxu0 0.0
    %1821 = vmatpush2.msra.mxu0 0.0
    %1822 = vmatprep.subr.mxu0 0.0
    %1823 = vmatpush2.msra.mxu0 0.0
    %1824 = vmatprep.subr.mxu0 0.0
    %1825 = vmatpush2.msra.mxu0 0.0
    %1826 = vmatprep.mubr.f32.mxu0 0.0
    %1827 = vmatmul.mubr.f32.gmra.mxu0 %v1760
    %v1828 = vpop.f32.mrf.mxu0
    %v1829 = vadd.f32 %v319, %v1828
    %v1830 = vpop.f32.mrf.mxu0
    %1831 = vdwg.mxu0
    %v1832 = vadd.f32 %v1829, %v1730
    %v1833 = vxor.u32 %v1832, 2147483648
    %v1834 = vmul.f32 %v1833, 1.442695
    %v1835 = vpow.pop %v1834
    %v1836 = vadd.f32 %v1835, 1.0
    %v1837 = vrcp.pop %v1836
    %v1838 = vmul.f32 1.0, %v1837
    %v1839 = vtanh.pop %v1832
    %v1840 = vmul.f32 %v1838, %v1645
    %1842 = vrot.lane.b32.xlu0 %v1839, 64
    %v1843 = vpop.permute.xlu0 %1842
    %v1845 = vmul.f32 %v1838, %v1843
    %1847 = vrot.lane.b32.xlu0 %v1845, 32
    %v1848 = vpop.permute.xlu0 %1847
    %v1850 = vadd.f32 %v1840, %v1848
    %v1851 = vtanh.pop %v1850
    %1853 = vrot.lane.b32.xlu0 %v1851, 64
    %v1854 = vpop.permute.xlu0 %1853
    %v1856 = vmul.f32 %v1838, %v1854
    %v1857 = vld [vmem:[%s6] sm:$0xff]
    %v1858 = vld [vmem:[%s6 + $0x8] sm:$0xff]
    %v1859 = vld [vmem:[%s6 + $0x10] sm:$0xff]
    %v1860 = vld [vmem:[%s6 + $0x18] sm:$0xff]
    %v1861 = vld [vmem:[%s7] sm:$0x1]
    %v1863 = vlaneseq
    %v1864 = vshrl.u32 %v1863, 7
    %v1865 = vsub.s32 0, %v1864
    %v1866 = vrot.slane %v1861, %v1865
    %1869 = vrot.lane.b32.xlu0 %v1856, 32
    %v1870 = vpop.permute.xlu0 %1869
    %v1871 = vsel %vm324, %v1870, 0
    %1873 = vmatprep.subr.mxu0 0.0
    %1874 = vmatpush1.msra.mxu0 0.0
    %1875 = vmatprep.subr.mxu0 0.0
    %1876 = vmatpush1.msra.mxu0 0.0
    %1877 = vmatprep.subr.mxu0 0.0
    %1878 = vmatpush1.msra.mxu0 0.0
    %1879 = vmatprep.subr.mxu0 0.0
    %1880 = vmatpush1.msra.mxu0 0.0
    %1881 = vmatprep.subr.mxu0 0.0
    %1882 = vmatpush1.msra.mxu0 0.0
    %1883 = vmatprep.subr.mxu0 0.0
    %1884 = vmatpush1.msra.mxu0 0.0
    %1885 = vmatprep.subr.mxu0 0.0
    %1886 = vmatpush1.msra.mxu0 0.0
    %1887 = vmatprep.subr.mxu0 0.0
    %1888 = vmatpush1.msra.mxu0 0.0
    %1889 = vmatprep.subr.mxu0 0.0
    %1890 = vmatpush1.msra.mxu0 0.0
    %1891 = vmatprep.subr.mxu0 0.0
    %1892 = vmatpush1.msra.mxu0 0.0
    %1893 = vmatprep.subr.mxu0 0.0
    %1894 = vmatpush1.msra.mxu0 0.0
    %1895 = vmatprep.subr.mxu0 0.0
    %1896 = vmatpush1.msra.mxu0 0.0
    %1897 = vmatprep.subr.mxu0 0.0
    %1898 = vmatpush1.msra.mxu0 %v1860
    %1899 = vmatprep.subr.mxu0 0.0
    %1900 = vmatpush1.msra.mxu0 %v1859
    %1901 = vmatprep.subr.mxu0 0.0
    %1902 = vmatpush1.msra.mxu0 %v1858
    %1903 = vmatprep.subr.mxu0 0.0
    %1904 = vmatpush1.msra.mxu0 %v1857
    %1905 = vmatprep.subr.mxu0 0.0
    %1906 = vmatpush2.msra.mxu0 0.0
    %1907 = vmatprep.subr.mxu0 0.0
    %1908 = vmatpush2.msra.mxu0 0.0
    %1909 = vmatprep.subr.mxu0 0.0
    %1910 = vmatpush2.msra.mxu0 0.0
    %1911 = vmatprep.subr.mxu0 0.0
    %1912 = vmatpush2.msra.mxu0 0.0
    %1913 = vmatprep.subr.mxu0 0.0
    %1914 = vmatpush2.msra.mxu0 0.0
    %1915 = vmatprep.subr.mxu0 0.0
    %1916 = vmatpush2.msra.mxu0 0.0
    %1917 = vmatprep.subr.mxu0 0.0
    %1918 = vmatpush2.msra.mxu0 0.0
    %1919 = vmatprep.subr.mxu0 0.0
    %1920 = vmatpush2.msra.mxu0 0.0
    %1921 = vmatprep.subr.mxu0 0.0
    %1922 = vmatpush2.msra.mxu0 0.0
    %1923 = vmatprep.subr.mxu0 0.0
    %1924 = vmatpush2.msra.mxu0 0.0
    %1925 = vmatprep.subr.mxu0 0.0
    %1926 = vmatpush2.msra.mxu0 0.0
    %1927 = vmatprep.subr.mxu0 0.0
    %1928 = vmatpush2.msra.mxu0 0.0
    %1929 = vmatprep.subr.mxu0 0.0
    %1930 = vmatpush2.msra.mxu0 0.0
    %1931 = vmatprep.subr.mxu0 0.0
    %1932 = vmatpush2.msra.mxu0 0.0
    %1933 = vmatprep.subr.mxu0 0.0
    %1934 = vmatpush2.msra.mxu0 0.0
    %1935 = vmatprep.subr.mxu0 0.0
    %1936 = vmatpush2.msra.mxu0 0.0
    %1937 = vmatprep.mubr.f32.mxu0 0.0
    %1938 = vmatmul.mubr.f32.gmra.mxu0 %v1871
    %v1939 = vpop.f32.mrf.mxu0
    %v1940 = vadd.f32 %v1866, %v1939
    %v1941 = vpop.f32.mrf.mxu0
    %1942 = vdwg.mxu0
    %vm1943 = vcmask 130048
    %1944 = vst.msk [vmem:[#allocation5] sm:$0xff] %vm1943, %v1940
    // Predicated region
    $region38: #{tpu_custom_call.1} parent=1 // pred_check
      _
    $region39: #{tpu_custom_call.1} parent=1 // pred_check_branch
      %1946 = sbr.rel (0) target = $region41
    $region40: #{tpu_custom_call.1} parent=1 // pred_region
      %s1948 = ssub.s32 128, 128
      %1949 = vsyncadd [#allocation4], %s1948
      %s1951 = sshll.u32 [#allocation5], 4
      %s1952 = int_to_ptr.vmem [resolvable:$true] %s1951
      %1954 = dma.vmem_to_hbm [thread:$0]  %s1952, 128, %s8, [#allocation4]
    $region41: #{tpu_custom_call.1} parent=1 // pred_fallthru
      _
    // Predicated region
    $region42: #{tpu_custom_call.1} parent=1 // pred_check
      _
    $region43: #{tpu_custom_call.1} parent=1 // pred_check_branch
      %1956 = sbr.rel (0) target = $region45
    $region44: #{tpu_custom_call.1} parent=1 // pred_region
      %1957 = dma.done [#allocation4], 128
    $region45: #{tpu_custom_call.1} parent=1 // pred_fallthru
      _
    %1958 = vsyncpa [#allocation3], 1
    %1959 = vsyncpa [#allocation4], 1

</llo_original>
